<compile_context>
chip_gen: v6e
topology: v6e:2x2x1
jax: 0.10.0
libtpu: 0.0.40
codegen_flags: <defaults>
</compile_context>

<pallas_src>
import jax
import jax.numpy as jnp
import numpy as np
from jax.experimental import pallas as pl
from jax.experimental.pallas import tpu as pltpu


def _sigmoid_tanh(v):
    # sigmoid(x) == 0.5*tanh(0.5*x)+0.5 : one EUP trip + one cheap VPU FMA (vs exp + divide).
    return 0.5 * jnp.tanh(0.5 * v) + 0.5


def _round_up(n, m):
    return ((n + m - 1) // m) * m


def _mlp_kernel(x_ref, w1_ref, b1_ref, w2_ref, b2_ref, w3_ref, b3_ref, o_ref):
    """Fused 3-layer MLP on lane-dense folded operands.

    x_ref : (tile_rows, fold*d_in)  f32  -> cast to bf16 in-register (saves a wrapper pass)
    wi_ref: block-diagonal bf16 weights; bi_ref: f32 tiled biases (1, fold*out_i)
    o_ref : (tile_rows, fold*d_out) f32  -> unmasked, lane-dense stores
    """
    x = x_ref[...].astype(jnp.bfloat16)  # VPU cast, hidden under the MXU / DMA slots
    h1 = jnp.dot(x, w1_ref[...], preferred_element_type=jnp.float32) + b1_ref[...]
    h1 = _sigmoid_tanh(h1)
    h2 = jnp.dot(h1.astype(jnp.bfloat16), w2_ref[...],
                 preferred_element_type=jnp.float32) + b2_ref[...]
    h2 = _sigmoid_tanh(h2)
    out = jnp.dot(h2.astype(jnp.bfloat16), w3_ref[...],
                  preferred_element_type=jnp.float32) + b3_ref[...]
    # Final layer has NO activation (matches `if i < len(prev_shape) - 1` in architecture()).
    o_ref[...] = out


def fnn_reference(x, params):
    """Pure-JAX f32 reference matching the PyTorch forward semantics."""
    n = len(params)
    h = x
    for i, (w, b) in enumerate(params):
        h = h @ w + b
        if i < n - 1:
            h = jax.nn.sigmoid(h)
    return h


def fnn_reference_bf16(x, params):
    """Reference with the kernel's exact recipe (bf16 matmul, f32 accum, tanh-form sigmoid).
    Also used for the < fold-row tail that the Pallas path skips."""
    n = len(params)
    h = x.astype(jnp.bfloat16)
    for i, (w, b) in enumerate(params):
        h = jnp.dot(h, w.astype(jnp.bfloat16), preferred_element_type=jnp.float32) + b
        if i < n - 1:
            h = _sigmoid_tanh(h).astype(jnp.bfloat16)
    return h


def fold_params(params, fold):
    """Expand (Wi, bi) to block-diagonal bf16 weights / fold-x tiled f32 biases.

    kron(I_fold, W) puts `fold` copies of W on the diagonal, so the folded row
    [row_0 | row_1 | ... | row_{fold-1}] @ W_folded == [row_0@W | ... | row_{fold-1}@W].
    (In a serving loop these are parameters: fold once and reuse.)
    """
    eye = jnp.eye(fold, dtype=jnp.float32)
    return [(jnp.kron(eye, w).astype(jnp.bfloat16), jnp.tile(b, (1, fold)))
            for w, b in params]


def fnn_forward(x, params, *, tile_b=8192, force_pallas=False):
    """Run the fused lane-dense MLP Pallas kernel.

    x: (B, D_in) float32
    params: ((W1, b1), (W2, b2), (W3, b3)) with Wi of shape (in_i, out_i), bi of shape (1, out_i)
    tile_b: approximate batch rows (pre-fold) per grid step.
    """
    (w1, b1), (w2, b2), (w3, b3) = params
    B, d_in = x.shape
    d_out = w3.shape[1]

    # Tiny problems: pallas_call fixed overhead >> this whole MLP; let XLA fuse it.
    if not force_pallas and B * d_in < 64 * 1024:
        return fnn_reference(x, params)

    # Fold factor: chosen so the folded output width is exactly 128 lanes (d_out=8 -> 16).
    if 0 < d_out <= 128 and 128 % d_out == 0:
        fold = 128 // d_out
    else:
        # TODO(synk): lane-dense fold assumes 128 % d_out == 0; other widths fall back to XLA.
        return fnn_reference(x, params)

    tail = B % fold                       # rows that don't fill a fold group (< fold of them)
    b_main = B - tail
    outs = []

    if b_main > 0:
        bf = b_main // fold                                            # folded batch rows
        xf = (x[:b_main] if tail else x).reshape(bf, fold * d_in)      # free row-major reshape
        (w1f, b1f), (w2f, b2f), (w3f, b3f) = fold_params(params, fold)

        # Folded-row tile: multiple of 8 (f32 sublane packing).  Caps:
        #  * absolute cap keeps x/out tiles + f32 intermediates well under the default
        #    scoped-VMEM limit on every generation (v7x only has 64 MiB physical VMEM);
        #  * >= 2 grid steps whenever possible so v7x's two TensorCores both get work
        #    ("parallel" axis) and the DMA/compute pipeline has something to overlap.
        # Partial last blocks are fine: Pallas masks out-of-bounds rows on load and store.
        tile_rows = _round_up(max(tile_b // fold, 8), 8)
        tile_rows = min(tile_rows, 1024)
        if bf <= 8:
            tile_rows = bf               # single full-extent block
        else:
            tile_rows = min(tile_rows, _round_up(pl.cdiv(bf, 2), 8))
        grid = (pl.cdiv(bf, tile_rows),)

        def full_spec(arr):
            # Weights / biases: constant index_map -> the same full block every grid step,
            # so Pallas DMAs them only once; ~1 MiB total bf16, so VMEM residency is cheap.
            # (pipeline_mode=pl.Buffered(1) would drop the idle second buffer, but at this
            #  size it is not worth the extra compile surface.)
            return pl.BlockSpec(arr.shape, lambda i: (0,) * arr.ndim)

        out_f = pl.pallas_call(
            _mlp_kernel,
            out_shape=jax.ShapeDtypeStruct((bf, fold * d_out), jnp.float32),
            grid_spec=pltpu.PrefetchScalarGridSpec(
                num_scalar_prefetch=0,
                grid=grid,
                in_specs=[
                    pl.BlockSpec((tile_rows, fold * d_in), lambda i: (i, 0)),
                    full_spec(w1f), full_spec(b1f),
                    full_spec(w2f), full_spec(b2f),
                    full_spec(w3f), full_spec(b3f),
                ],
                out_specs=pl.BlockSpec((tile_rows, fold * d_out), lambda i: (i, 0)),
            ),
            compiler_params=pltpu.CompilerParams(
                # Batch axis is fully independent -> megacore split on v7x when grid >= 2.
                dimension_semantics=("parallel",),
            ),
        )(xf, w1f, b1f, w2f, b2f, w3f, b3f)

        outs.append(out_f.reshape(b_main, d_out))      # free reshape back to (rows, d_out)

    if tail > 0:
        # < fold leftover rows: same numeric recipe as the kernel, via XLA (not worth a launch).
        outs.append(fnn_reference_bf16(x[b_main:], params))

    return outs[0] if len(outs) == 1 else jnp.concatenate(outs, axis=0)


def init_params(key, layer_sizes, gain=1.0):
    """Deterministic init mimicking the PyTorch module:
    weights: xavier_uniform_ with gain (calculate_gain('sigmoid') == 1.0),
    biases:  default nn.Linear init uniform(-1/sqrt(fan_in), 1/sqrt(fan_in)).
    Weights returned already transposed to (in, out) for y = x @ W + b."""
    params = []
    keys = jax.random.split(key, len(layer_sizes) - 1)
    for k, fan_in, fan_out in zip(keys, layer_sizes[:-1], layer_sizes[1:]):
        kw, kb = jax.random.split(k)
        bound_w = gain * float(np.sqrt(6.0 / (fan_in + fan_out)))
        w = jax.random.uniform(kw, (fan_in, fan_out), jnp.float32, -bound_w, bound_w)
        bound_b = 1.0 / float(np.sqrt(fan_in))
        b = jax.random.uniform(kb, (1, fan_out), jnp.float32, -bound_b, bound_b)
        params.append((w, b))
    return params


if __name__ == "__main__":
    # Shapes consistent with FNNModel(hidden_layer_sizes=(32, 32)) fit on X:(B,16), y:(B,8):
    # layers 16 -> 32 -> 32 -> 8, sigmoid between layers, no activation on the last layer.
    D_IN, H1, H2, D_OUT = 16, 32, 32, 8

    key = jax.random.PRNGKey(0)
    kx1, kx2, kx3, kp = jax.random.split(key, 4)
    params = init_params(kp, (D_IN, H1, H2, D_OUT), gain=1.0)  # gain('sigmoid') == 1.0

    def check(out, x):
        np.testing.assert_allclose(np.asarray(out), np.asarray(fnn_reference_bf16(x, params)),
                                   rtol=5e-3, atol=5e-3)
        np.testing.assert_allclose(np.asarray(out), np.asarray(fnn_reference(x, params)),
                                   rtol=5e-2, atol=5e-2)

    # --- small batch: 128 rows -> 8 folded lane-dense rows, single-block Pallas call ---
    x_small = jax.random.normal(kx1, (128, D_IN), jnp.float32)
    out_small = jax.block_until_ready(fnn_forward(x_small, params, force_pallas=True))
    assert out_small.shape == (128, D_OUT)
    check(out_small, x_small)

    # --- 2000 rows -> 125 folded rows: >= 2 "parallel" grid steps (v7x megacore) and a
    #     masked partial last block, with no wrapper pad / cast passes ---
    x_big = jax.random.normal(kx2, (2000, D_IN), jnp.float32)
    out_big = jax.block_until_ready(fnn_forward(x_big, params, force_pallas=True))
    assert out_big.shape == (2000, D_OUT)
    check(out_big, x_big)

    # --- 1003 rows: exercises the XLA tail path for the 11 rows that don't fill a fold group ---
    x_odd = jax.random.normal(kx3, (1003, D_IN), jnp.float32)
    out_odd = jax.block_until_ready(fnn_forward(x_odd, params, force_pallas=True))
    assert out_odd.shape == (1003, D_OUT)
    check(out_odd, x_odd)

    # TODO(synk): dropout_p>0 and batch_normalization=True branches of architecture() are
    # disabled by default in the module and not implemented in the kernel.
    print("KERNEL_OK")
</pallas_src>

<mosaic_0001>
module attributes {stable_mosaic.version = 11 : i64} {
  func.func @_mlp_kernel(%arg0: i32, %arg1: memref<8x256xf32, #tpu.memory_space<vmem>>, %arg2: memref<256x512xbf16, #tpu.memory_space<vmem>>, %arg3: memref<1x512xf32, #tpu.memory_space<vmem>>, %arg4: memref<512x512xbf16, #tpu.memory_space<vmem>>, %arg5: memref<1x512xf32, #tpu.memory_space<vmem>>, %arg6: memref<512x128xbf16, #tpu.memory_space<vmem>>, %arg7: memref<1x128xf32, #tpu.memory_space<vmem>>, %arg8: memref<8x128xf32, #tpu.memory_space<vmem>>) attributes {dimension_semantics = [#tpu.dimension_semantics<parallel>], iteration_bounds = array<i64: 1>, scalar_prefetch = 0 : i64, scratch_operands = 0 : i64, tpu.core_type = #tpu.core_type<tc>, window_params = [{transform_indices = @transform_0, window_bounds = array<i64: 8, 256>}, {pipeline_mode = #tpu.pipeline_mode<synchronous>, transform_indices = @transform_1, window_bounds = array<i64: 256, 512>}, {pipeline_mode = #tpu.pipeline_mode<synchronous>, transform_indices = @transform_2, window_bounds = array<i64: 1, 512>}, {pipeline_mode = #tpu.pipeline_mode<synchronous>, transform_indices = @transform_3, window_bounds = array<i64: 512, 512>}, {pipeline_mode = #tpu.pipeline_mode<synchronous>, transform_indices = @transform_4, window_bounds = array<i64: 1, 512>}, {pipeline_mode = #tpu.pipeline_mode<synchronous>, transform_indices = @transform_5, window_bounds = array<i64: 512, 128>}, {pipeline_mode = #tpu.pipeline_mode<synchronous>, transform_indices = @transform_6, window_bounds = array<i64: 1, 128>}, {transform_indices = @transform_7, window_bounds = array<i64: 8, 128>}]} {
    %c0 = arith.constant 0 : index
    %c0_0 = arith.constant 0 : index
    %0 = vector.load %arg1[%c0, %c0_0] : memref<8x256xf32, #tpu.memory_space<vmem>>, vector<8x256xf32>
    %1 = arith.truncf %0 : vector<8x256xf32> to vector<8x256xbf16>
    %c0_1 = arith.constant 0 : index
    %c0_2 = arith.constant 0 : index
    %2 = vector.load %arg2[%c0_1, %c0_2] : memref<256x512xbf16, #tpu.memory_space<vmem>>, vector<256x512xbf16>
    %cst = arith.constant dense<0.000000e+00> : vector<8x512xf32>
    %3 = tpu.matmul %1, %2, %cst {dimension_numbers = #tpu.dot_dimension_numbers<[1], [0], [0], [1], [0, 0, 1, 1], [], []>} : vector<8x256xbf16>, vector<256x512xbf16>, vector<8x512xf32> -> vector<8x512xf32>
    %c0_3 = arith.constant 0 : index
    %c0_4 = arith.constant 0 : index
    %4 = vector.load %arg3[%c0_3, %c0_4] : memref<1x512xf32, #tpu.memory_space<vmem>>, vector<1x512xf32>
    %5 = vector.broadcast %4 : vector<1x512xf32> to vector<8x512xf32>
    %6 = arith.addf %3, %5 : vector<8x512xf32>
    %cst_5 = arith.constant 5.000000e-01 : f32
    %7 = vector.broadcast %cst_5 : f32 to vector<8x512xf32>
    %8 = arith.mulf %7, %6 : vector<8x512xf32>
    %9 = math.tanh %8 : vector<8x512xf32>
    %cst_6 = arith.constant 5.000000e-01 : f32
    %10 = vector.broadcast %cst_6 : f32 to vector<8x512xf32>
    %11 = arith.mulf %10, %9 : vector<8x512xf32>
    %cst_7 = arith.constant 5.000000e-01 : f32
    %12 = vector.broadcast %cst_7 : f32 to vector<8x512xf32>
    %13 = arith.addf %11, %12 : vector<8x512xf32>
    %14 = arith.truncf %13 : vector<8x512xf32> to vector<8x512xbf16>
    %c0_8 = arith.constant 0 : index
    %c0_9 = arith.constant 0 : index
    %15 = vector.load %arg4[%c0_8, %c0_9] : memref<512x512xbf16, #tpu.memory_space<vmem>>, vector<512x512xbf16>
    %cst_10 = arith.constant dense<0.000000e+00> : vector<8x512xf32>
    %16 = tpu.matmul %14, %15, %cst_10 {dimension_numbers = #tpu.dot_dimension_numbers<[1], [0], [0], [1], [0, 0, 1, 1], [], []>} : vector<8x512xbf16>, vector<512x512xbf16>, vector<8x512xf32> -> vector<8x512xf32>
    %c0_11 = arith.constant 0 : index
    %c0_12 = arith.constant 0 : index
    %17 = vector.load %arg5[%c0_11, %c0_12] : memref<1x512xf32, #tpu.memory_space<vmem>>, vector<1x512xf32>
    %18 = vector.broadcast %17 : vector<1x512xf32> to vector<8x512xf32>
    %19 = arith.addf %16, %18 : vector<8x512xf32>
    %cst_13 = arith.constant 5.000000e-01 : f32
    %20 = vector.broadcast %cst_13 : f32 to vector<8x512xf32>
    %21 = arith.mulf %20, %19 : vector<8x512xf32>
    %22 = math.tanh %21 : vector<8x512xf32>
    %cst_14 = arith.constant 5.000000e-01 : f32
    %23 = vector.broadcast %cst_14 : f32 to vector<8x512xf32>
    %24 = arith.mulf %23, %22 : vector<8x512xf32>
    %cst_15 = arith.constant 5.000000e-01 : f32
    %25 = vector.broadcast %cst_15 : f32 to vector<8x512xf32>
    %26 = arith.addf %24, %25 : vector<8x512xf32>
    %27 = arith.truncf %26 : vector<8x512xf32> to vector<8x512xbf16>
    %c0_16 = arith.constant 0 : index
    %c0_17 = arith.constant 0 : index
    %28 = vector.load %arg6[%c0_16, %c0_17] : memref<512x128xbf16, #tpu.memory_space<vmem>>, vector<512x128xbf16>
    %cst_18 = arith.constant dense<0.000000e+00> : vector<8x128xf32>
    %29 = tpu.matmul %27, %28, %cst_18 {dimension_numbers = #tpu.dot_dimension_numbers<[1], [0], [0], [1], [0, 0, 1, 1], [], []>} : vector<8x512xbf16>, vector<512x128xbf16>, vector<8x128xf32> -> vector<8x128xf32>
    %c0_19 = arith.constant 0 : index
    %c0_20 = arith.constant 0 : index
    %30 = vector.load %arg7[%c0_19, %c0_20] : memref<1x128xf32, #tpu.memory_space<vmem>>, vector<1x128xf32>
    %31 = vector.broadcast %30 : vector<1x128xf32> to vector<8x128xf32>
    %32 = arith.addf %29, %31 : vector<8x128xf32>
    %c0_21 = arith.constant 0 : index
    %c0_22 = arith.constant 0 : index
    %33 = vector.load %arg8[%c0_21, %c0_22] : memref<8x128xf32, #tpu.memory_space<vmem>>, vector<8x128xf32>
    tpu.vector_store %arg8[%c0_21, %c0_22], %32 {strides = array<i32>} : memref<8x128xf32, #tpu.memory_space<vmem>>, vector<8x128xf32>,
    return
  }
  func.func @transform_0(%arg0: i32) -> (i32, i32) {
    %c0_i32 = arith.constant 0 : i32
    %c0_i32_0 = arith.constant 0 : i32
    return %arg0, %c0_i32 : i32, i32
  }
  func.func @transform_1(%arg0: i32) -> (i32, i32) {
    %c0_i32 = arith.constant 0 : i32
    %c0_i32_0 = arith.constant 0 : i32
    %c0_i32_1 = arith.constant 0 : i32
    return %c0_i32, %c0_i32_0 : i32, i32
  }
  func.func @transform_2(%arg0: i32) -> (i32, i32) {
    %c0_i32 = arith.constant 0 : i32
    %c0_i32_0 = arith.constant 0 : i32
    %c0_i32_1 = arith.constant 0 : i32
    return %c0_i32, %c0_i32_0 : i32, i32
  }
  func.func @transform_3(%arg0: i32) -> (i32, i32) {
    %c0_i32 = arith.constant 0 : i32
    %c0_i32_0 = arith.constant 0 : i32
    %c0_i32_1 = arith.constant 0 : i32
    return %c0_i32, %c0_i32_0 : i32, i32
  }
  func.func @transform_4(%arg0: i32) -> (i32, i32) {
    %c0_i32 = arith.constant 0 : i32
    %c0_i32_0 = arith.constant 0 : i32
    %c0_i32_1 = arith.constant 0 : i32
    return %c0_i32, %c0_i32_0 : i32, i32
  }
  func.func @transform_5(%arg0: i32) -> (i32, i32) {
    %c0_i32 = arith.constant 0 : i32
    %c0_i32_0 = arith.constant 0 : i32
    %c0_i32_1 = arith.constant 0 : i32
    return %c0_i32, %c0_i32_0 : i32, i32
  }
  func.func @transform_6(%arg0: i32) -> (i32, i32) {
    %c0_i32 = arith.constant 0 : i32
    %c0_i32_0 = arith.constant 0 : i32
    %c0_i32_1 = arith.constant 0 : i32
    return %c0_i32, %c0_i32_0 : i32, i32
  }
  func.func @transform_7(%arg0: i32) -> (i32, i32) {
    %c0_i32 = arith.constant 0 : i32
    %c0_i32_0 = arith.constant 0 : i32
    return %arg0, %c0_i32 : i32, i32
  }
}

</mosaic_0001>

<llo_original>
// kernel: tpu_custom_call.1
$region0: #{tpu_custom_call.1}
  #allocation0 [shape = 'u32[]', space=smem, size = 0x4, offset = 0x4, fixed_abs, tag = 'smem constant byte address 0x4 - core index']
  #allocation1 [shape = 'u32[144,128]{1,0:T(1,128)}', space=vmem, size = 0x12000, scoped, tag = 'internal scratch']
  %s0 = inlined_call_operand.hbm [shape: f32[8,256], index: 0, kind: input, shape index: {}]
  %s1 = inlined_call_operand.hbm [shape: bf16[256,512], index: 1, kind: input, shape index: {}]
  %s2 = inlined_call_operand.hbm [shape: f32[1,512], index: 2, kind: input, shape index: {}]
  %s3 = inlined_call_operand.hbm [shape: bf16[512,512], index: 3, kind: input, shape index: {}]
  %s4 = inlined_call_operand.vmem [shape: f32[1,512], index: 4, kind: input, shape index: {}]
  %s5 = inlined_call_operand.hbm [shape: bf16[512,128], index: 5, kind: input, shape index: {}]
  %s6 = inlined_call_operand.vmem [shape: f32[1,128], index: 6, kind: input, shape index: {}]
  %s7 = inlined_call_operand.hbm [shape: f32[8,128], index: 7, kind: output, shape index: {}]
  %s8 = sld [smem:[#allocation0]]
  $region58: #{tpu_custom_call.1} parent=0
    _
  %s10 = ssub.s32 1, %s8
  %s11 = scalar_select 0, %s10, %s8
  $region1: #{tpu_custom_call.1} parent=0
    #allocation2 [shape = 'u8[8192]{0}', space=vmem, size = 0x2000, scoped, tag = 'input window, operand 0, single buffered']
    #allocation3 [shape = 's32[1]{0}', space=sflag, size = 0x4, scoped, tag = 'scoped memory for tpu_custom_call.1']
    #allocation4 [shape = 's32[1]{0}', space=sflag, size = 0x4, scoped, tag = 'scoped memory for tpu_custom_call.1']
    #allocation5 [shape = 'u8[262144]{0}', space=vmem, size = 0x40000, scoped, tag = 'input window, operand 1, single buffered']
    #allocation6 [shape = 's32[1]{0}', space=sflag, size = 0x4, scoped, tag = 'scoped memory for tpu_custom_call.1']
    #allocation7 [shape = 'u8[2048]{0}', space=vmem, size = 0x800, scoped, tag = 'input window, operand 2, single buffered']
    #allocation8 [shape = 'u8[524288]{0}', space=vmem, size = 0x80000, scoped, tag = 'input window, operand 3, single buffered']
    #allocation9 [shape = 's32[1]{0}', space=sflag, size = 0x4, scoped, tag = 'scoped memory for tpu_custom_call.1']
    #allocation10 [shape = 'u8[131072]{0}', space=vmem, size = 0x20000, scoped, tag = 'input window, operand 5, single buffered']
    #allocation11 [shape = 'u8[4096]{0}', space=vmem, size = 0x1000, scoped, tag = 'output window, operand 0, single buffered']
    %12 = vsyncpa [#allocation3], 0
    %13 = vsyncpa [#allocation6], 0
    %14 = vsyncpa [#allocation9], 0
    %15 = vsyncpa [#allocation4], 0
    // Predicated region
    $region2: #{tpu_custom_call.1} parent=1 // pred_check
      _
    $region3: #{tpu_custom_call.1} parent=1 // pred_check_branch
      %17 = sbr.rel (0) target = $region5
    $region4: #{tpu_custom_call.1} parent=1 // pred_region
      %s19 = ssub.s32 256, 256
      %20 = vsyncadd [#allocation3], %s19
      %s22 = sshll.u32 [#allocation2], 4
      %s23 = int_to_ptr.vmem [resolvable:$true] %s22
      %25 = dma.hbm_to_vmem [thread:$0]  %s0, 256, %s23, [#allocation3]
    $region5: #{tpu_custom_call.1} parent=1 // pred_fallthru
      _
    // Predicated region
    $region6: #{tpu_custom_call.1} parent=1 // pred_check
      _
    $region7: #{tpu_custom_call.1} parent=1 // pred_check_branch
      %27 = sbr.rel (0) target = $region9
    $region8: #{tpu_custom_call.1} parent=1 // pred_region
      %s29 = ssub.s32 8192, 8192
      %30 = vsyncadd [#allocation6], %s29
      %s31 = sshll.u32 [#allocation5], 4
      %s32 = int_to_ptr.vmem [resolvable:$true] %s31
      %37 = dma.hbm_to_vmem [thread:$0]  %s1, 8192, %s32, [#allocation6], 256, 256, 16
    $region9: #{tpu_custom_call.1} parent=1 // pred_fallthru
      _
    // Predicated region
    $region10: #{tpu_custom_call.1} parent=1 // pred_check
      _
    $region11: #{tpu_custom_call.1} parent=1 // pred_check_branch
      %39 = sbr.rel (0) target = $region13
    $region12: #{tpu_custom_call.1} parent=1 // pred_region
      %s41 = ssub.s32 64, 64
      %42 = vsyncadd [#allocation6], %s41
      %s44 = sshll.u32 [#allocation7], 4
      %s45 = int_to_ptr.vmem [resolvable:$true] %s44
      %47 = dma.hbm_to_vmem [thread:$0]  %s2, 64, %s45, [#allocation6]
    $region13: #{tpu_custom_call.1} parent=1 // pred_fallthru
      _
    // Predicated region
    $region14: #{tpu_custom_call.1} parent=1 // pred_check
      _
    $region15: #{tpu_custom_call.1} parent=1 // pred_check_branch
      %49 = sbr.rel (0) target = $region17
    $region16: #{tpu_custom_call.1} parent=1 // pred_region
      %s51 = ssub.s32 16384, 16384
      %52 = vsyncadd [#allocation9], %s51
      %s53 = sshll.u32 [#allocation8], 4
      %s54 = int_to_ptr.vmem [resolvable:$true] %s53
      %59 = dma.hbm_to_vmem [thread:$0]  %s3, 16384, %s54, [#allocation9], 256, 256, 16
    $region17: #{tpu_custom_call.1} parent=1 // pred_fallthru
      _
    // Predicated region
    $region18: #{tpu_custom_call.1} parent=1 // pred_check
      _
    $region19: #{tpu_custom_call.1} parent=1 // pred_check_branch
      %61 = sbr.rel (0) target = $region21
    $region20: #{tpu_custom_call.1} parent=1 // pred_region
      _
    $region21: #{tpu_custom_call.1} parent=1 // pred_fallthru
      _
    // Predicated region
    $region22: #{tpu_custom_call.1} parent=1 // pred_check
      _
    $region23: #{tpu_custom_call.1} parent=1 // pred_check_branch
      %63 = sbr.rel (0) target = $region25
    $region24: #{tpu_custom_call.1} parent=1 // pred_region
      %s65 = ssub.s32 4096, 4096
      %66 = vsyncadd [#allocation9], %s65
      %s67 = sshll.u32 [#allocation10], 4
      %s68 = int_to_ptr.vmem [resolvable:$true] %s67
      %73 = dma.hbm_to_vmem [thread:$0]  %s5, 4096, %s68, [#allocation9], 64, 64, 4
    $region25: #{tpu_custom_call.1} parent=1 // pred_fallthru
      _
    // Predicated region
    $region26: #{tpu_custom_call.1} parent=1 // pred_check
      _
    $region27: #{tpu_custom_call.1} parent=1 // pred_check_branch
      %75 = sbr.rel (0) target = $region29
    $region28: #{tpu_custom_call.1} parent=1 // pred_region
      _
    $region29: #{tpu_custom_call.1} parent=1 // pred_fallthru
      _
    // Predicated region
    $region30: #{tpu_custom_call.1} parent=1 // pred_check
      _
    $region31: #{tpu_custom_call.1} parent=1 // pred_check_branch
      %77 = sbr.rel (0) target = $region33
    $region32: #{tpu_custom_call.1} parent=1 // pred_region
      %78 = dma.done [#allocation3], 256
    $region33: #{tpu_custom_call.1} parent=1 // pred_fallthru
      _
    // Predicated region
    $region34: #{tpu_custom_call.1} parent=1 // pred_check
      _
    $region35: #{tpu_custom_call.1} parent=1 // pred_check_branch
      %80 = sbr.rel (0) target = $region37
    $region36: #{tpu_custom_call.1} parent=1 // pred_region
      %81 = dma.done [#allocation6], 8192
    $region37: #{tpu_custom_call.1} parent=1 // pred_fallthru
      _
    // Predicated region
    $region38: #{tpu_custom_call.1} parent=1 // pred_check
      _
    $region39: #{tpu_custom_call.1} parent=1 // pred_check_branch
      %83 = sbr.rel (0) target = $region41
    $region40: #{tpu_custom_call.1} parent=1 // pred_region
      %84 = dma.done [#allocation6], 64
    $region41: #{tpu_custom_call.1} parent=1 // pred_fallthru
      _
    // Predicated region
    $region42: #{tpu_custom_call.1} parent=1 // pred_check
      _
    $region43: #{tpu_custom_call.1} parent=1 // pred_check_branch
      %86 = sbr.rel (0) target = $region45
    $region44: #{tpu_custom_call.1} parent=1 // pred_region
      %87 = dma.done [#allocation9], 16384
    $region45: #{tpu_custom_call.1} parent=1 // pred_fallthru
      _
    // Predicated region
    $region46: #{tpu_custom_call.1} parent=1 // pred_check
      _
    $region47: #{tpu_custom_call.1} parent=1 // pred_check_branch
      %89 = sbr.rel (0) target = $region49
    $region48: #{tpu_custom_call.1} parent=1 // pred_region
      %90 = dma.done [#allocation9], 4096
    $region49: #{tpu_custom_call.1} parent=1 // pred_fallthru
      _
    %v92 = vld [vmem:[#allocation2] sm:$0xff]
    %v93 = vld [vmem:[#allocation2 + $0x8] sm:$0xff]
    %v94 = vpack.c.bf16 %v92, %v92
    %v95 = vpack.c.bf16 %v93, %v93
    %v96 = vld [vmem:[#allocation5] sm:$0xff]
    %v97 = vld [vmem:[#allocation5 + $0x8] sm:$0xff]
    %v98 = vld [vmem:[#allocation5 + $0x10] sm:$0xff]
    %v99 = vld [vmem:[#allocation5 + $0x18] sm:$0xff]
    %v100 = vld [vmem:[#allocation5 + $0x20] sm:$0xff]
    %v101 = vld [vmem:[#allocation5 + $0x28] sm:$0xff]
    %v102 = vld [vmem:[#allocation5 + $0x30] sm:$0xff]
    %v103 = vld [vmem:[#allocation5 + $0x38] sm:$0xff]
    %v104 = vld [vmem:[#allocation5 + $0x40] sm:$0xff]
    %v105 = vld [vmem:[#allocation5 + $0x48] sm:$0xff]
    %v106 = vld [vmem:[#allocation5 + $0x50] sm:$0xff]
    %v107 = vld [vmem:[#allocation5 + $0x58] sm:$0xff]
    %v108 = vld [vmem:[#allocation5 + $0x60] sm:$0xff]
    %v109 = vld [vmem:[#allocation5 + $0x68] sm:$0xff]
    %v110 = vld [vmem:[#allocation5 + $0x70] sm:$0xff]
    %v111 = vld [vmem:[#allocation5 + $0x78] sm:$0xff]
    %v112 = vld [vmem:[#allocation5 + $0x80] sm:$0xff]
    %v113 = vld [vmem:[#allocation5 + $0x88] sm:$0xff]
    %v114 = vld [vmem:[#allocation5 + $0x90] sm:$0xff]
    %v115 = vld [vmem:[#allocation5 + $0x98] sm:$0xff]
    %v116 = vld [vmem:[#allocation5 + $0xa0] sm:$0xff]
    %v117 = vld [vmem:[#allocation5 + $0xa8] sm:$0xff]
    %v118 = vld [vmem:[#allocation5 + $0xb0] sm:$0xff]
    %v119 = vld [vmem:[#allocation5 + $0xb8] sm:$0xff]
    %v120 = vld [vmem:[#allocation5 + $0xc0] sm:$0xff]
    %v121 = vld [vmem:[#allocation5 + $0xc8] sm:$0xff]
    %v122 = vld [vmem:[#allocation5 + $0xd0] sm:$0xff]
    %v123 = vld [vmem:[#allocation5 + $0xd8] sm:$0xff]
    %v124 = vld [vmem:[#allocation5 + $0xe0] sm:$0xff]
    %v125 = vld [vmem:[#allocation5 + $0xe8] sm:$0xff]
    %v126 = vld [vmem:[#allocation5 + $0xf0] sm:$0xff]
    %v127 = vld [vmem:[#allocation5 + $0xf8] sm:$0xff]
    %v128 = vld [vmem:[#allocation5 + $0x100] sm:$0xff]
    %v129 = vld [vmem:[#allocation5 + $0x108] sm:$0xff]
    %v130 = vld [vmem:[#allocation5 + $0x110] sm:$0xff]
    %v131 = vld [vmem:[#allocation5 + $0x118] sm:$0xff]
    %v132 = vld [vmem:[#allocation5 + $0x120] sm:$0xff]
    %v133 = vld [vmem:[#allocation5 + $0x128] sm:$0xff]
    %v134 = vld [vmem:[#allocation5 + $0x130] sm:$0xff]
    %v135 = vld [vmem:[#allocation5 + $0x138] sm:$0xff]
    %v136 = vld [vmem:[#allocation5 + $0x140] sm:$0xff]
    %v137 = vld [vmem:[#allocation5 + $0x148] sm:$0xff]
    %v138 = vld [vmem:[#allocation5 + $0x150] sm:$0xff]
    %v139 = vld [vmem:[#allocation5 + $0x158] sm:$0xff]
    %v140 = vld [vmem:[#allocation5 + $0x160] sm:$0xff]
    %v141 = vld [vmem:[#allocation5 + $0x168] sm:$0xff]
    %v142 = vld [vmem:[#allocation5 + $0x170] sm:$0xff]
    %v143 = vld [vmem:[#allocation5 + $0x178] sm:$0xff]
    %v144 = vld [vmem:[#allocation5 + $0x180] sm:$0xff]
    %v145 = vld [vmem:[#allocation5 + $0x188] sm:$0xff]
    %v146 = vld [vmem:[#allocation5 + $0x190] sm:$0xff]
    %v147 = vld [vmem:[#allocation5 + $0x198] sm:$0xff]
    %v148 = vld [vmem:[#allocation5 + $0x1a0] sm:$0xff]
    %v149 = vld [vmem:[#allocation5 + $0x1a8] sm:$0xff]
    %v150 = vld [vmem:[#allocation5 + $0x1b0] sm:$0xff]
    %v151 = vld [vmem:[#allocation5 + $0x1b8] sm:$0xff]
    %v152 = vld [vmem:[#allocation5 + $0x1c0] sm:$0xff]
    %v153 = vld [vmem:[#allocation5 + $0x1c8] sm:$0xff]
    %v154 = vld [vmem:[#allocation5 + $0x1d0] sm:$0xff]
    %v155 = vld [vmem:[#allocation5 + $0x1d8] sm:$0xff]
    %v156 = vld [vmem:[#allocation5 + $0x1e0] sm:$0xff]
    %v157 = vld [vmem:[#allocation5 + $0x1e8] sm:$0xff]
    %v158 = vld [vmem:[#allocation5 + $0x1f0] sm:$0xff]
    %v159 = vld [vmem:[#allocation5 + $0x1f8] sm:$0xff]
    %v160 = vld [vmem:[#allocation7] sm:$0xf]
    %v162 = vlaneseq
    %v163 = vshrl.u32 %v162, 7
    %v164 = vsub.s32 0, %v163
    %v165 = vrot.slane %v160, %v164
    %v166 = vlaneseq
    %v167 = vshrl.u32 %v166, 7
    %v168 = vsub.s32 1, %v167
    %v169 = vrot.slane %v160, %v168
    %v170 = vlaneseq
    %v171 = vshrl.u32 %v170, 7
    %v172 = vsub.s32 2, %v171
    %v173 = vrot.slane %v160, %v172
    %v174 = vlaneseq
    %v175 = vshrl.u32 %v174, 7
    %v176 = vsub.s32 3, %v175
    %v177 = vrot.slane %v160, %v176
    %v246 = vunpack.c.l.b16 %v96
    %v247 = vunpack.c.h.b16 %v96
    %v248 = vunpack.c.l.b16 %v97
    %v249 = vunpack.c.h.b16 %v97
    %v250 = vunpack.c.l.b16 %v98
    %v251 = vunpack.c.h.b16 %v98
    %v252 = vunpack.c.l.b16 %v99
    %v253 = vunpack.c.h.b16 %v99
    %v254 = vunpack.c.l.b16 %v100
    %v255 = vunpack.c.h.b16 %v100
    %v256 = vunpack.c.l.b16 %v101
    %v257 = vunpack.c.h.b16 %v101
    %v258 = vunpack.c.l.b16 %v102
    %v259 = vunpack.c.h.b16 %v102
    %v260 = vunpack.c.l.b16 %v103
    %v261 = vunpack.c.h.b16 %v103
    %v262 = vunpack.c.l.b16 %v104
    %v263 = vunpack.c.h.b16 %v104
    %v264 = vunpack.c.l.b16 %v105
    %v265 = vunpack.c.h.b16 %v105
    %v266 = vunpack.c.l.b16 %v106
    %v267 = vunpack.c.h.b16 %v106
    %v268 = vunpack.c.l.b16 %v107
    %v269 = vunpack.c.h.b16 %v107
    %v270 = vunpack.c.l.b16 %v108
    %v271 = vunpack.c.h.b16 %v108
    %v272 = vunpack.c.l.b16 %v109
    %v273 = vunpack.c.h.b16 %v109
    %v274 = vunpack.c.l.b16 %v110
    %v275 = vunpack.c.h.b16 %v110
    %v276 = vunpack.c.l.b16 %v111
    %v277 = vunpack.c.h.b16 %v111
    %v278 = vunpack.c.l.b16 %v112
    %v279 = vunpack.c.h.b16 %v112
    %v280 = vunpack.c.l.b16 %v113
    %v281 = vunpack.c.h.b16 %v113
    %v282 = vunpack.c.l.b16 %v114
    %v283 = vunpack.c.h.b16 %v114
    %v284 = vunpack.c.l.b16 %v115
    %v285 = vunpack.c.h.b16 %v115
    %v286 = vunpack.c.l.b16 %v116
    %v287 = vunpack.c.h.b16 %v116
    %v288 = vunpack.c.l.b16 %v117
    %v289 = vunpack.c.h.b16 %v117
    %v290 = vunpack.c.l.b16 %v118
    %v291 = vunpack.c.h.b16 %v118
    %v292 = vunpack.c.l.b16 %v119
    %v293 = vunpack.c.h.b16 %v119
    %v294 = vunpack.c.l.b16 %v120
    %v295 = vunpack.c.h.b16 %v120
    %v296 = vunpack.c.l.b16 %v121
    %v297 = vunpack.c.h.b16 %v121
    %v298 = vunpack.c.l.b16 %v122
    %v299 = vunpack.c.h.b16 %v122
    %v300 = vunpack.c.l.b16 %v123
    %v301 = vunpack.c.h.b16 %v123
    %v302 = vunpack.c.l.b16 %v124
    %v303 = vunpack.c.h.b16 %v124
    %v304 = vunpack.c.l.b16 %v125
    %v305 = vunpack.c.h.b16 %v125
    %v306 = vunpack.c.l.b16 %v126
    %v307 = vunpack.c.h.b16 %v126
    %v308 = vunpack.c.l.b16 %v127
    %v309 = vunpack.c.h.b16 %v127
    %v310 = vunpack.c.l.b16 %v128
    %v311 = vunpack.c.h.b16 %v128
    %v312 = vunpack.c.l.b16 %v129
    %v313 = vunpack.c.h.b16 %v129
    %v314 = vunpack.c.l.b16 %v130
    %v315 = vunpack.c.h.b16 %v130
    %v316 = vunpack.c.l.b16 %v131
    %v317 = vunpack.c.h.b16 %v131
    %v318 = vunpack.c.l.b16 %v132
    %v319 = vunpack.c.h.b16 %v132
    %v320 = vunpack.c.l.b16 %v133
    %v321 = vunpack.c.h.b16 %v133
    %v322 = vunpack.c.l.b16 %v134
    %v323 = vunpack.c.h.b16 %v134
    %v324 = vunpack.c.l.b16 %v135
    %v325 = vunpack.c.h.b16 %v135
    %v326 = vunpack.c.l.b16 %v136
    %v327 = vunpack.c.h.b16 %v136
    %v328 = vunpack.c.l.b16 %v137
    %v329 = vunpack.c.h.b16 %v137
    %v330 = vunpack.c.l.b16 %v138
    %v331 = vunpack.c.h.b16 %v138
    %v332 = vunpack.c.l.b16 %v139
    %v333 = vunpack.c.h.b16 %v139
    %v334 = vunpack.c.l.b16 %v140
    %v335 = vunpack.c.h.b16 %v140
    %v336 = vunpack.c.l.b16 %v141
    %v337 = vunpack.c.h.b16 %v141
    %v338 = vunpack.c.l.b16 %v142
    %v339 = vunpack.c.h.b16 %v142
    %v340 = vunpack.c.l.b16 %v143
    %v341 = vunpack.c.h.b16 %v143
    %v342 = vunpack.c.l.b16 %v144
    %v343 = vunpack.c.h.b16 %v144
    %v344 = vunpack.c.l.b16 %v145
    %v345 = vunpack.c.h.b16 %v145
    %v346 = vunpack.c.l.b16 %v146
    %v347 = vunpack.c.h.b16 %v146
    %v348 = vunpack.c.l.b16 %v147
    %v349 = vunpack.c.h.b16 %v147
    %v350 = vunpack.c.l.b16 %v148
    %v351 = vunpack.c.h.b16 %v148
    %v352 = vunpack.c.l.b16 %v149
    %v353 = vunpack.c.h.b16 %v149
    %v354 = vunpack.c.l.b16 %v150
    %v355 = vunpack.c.h.b16 %v150
    %v356 = vunpack.c.l.b16 %v151
    %v357 = vunpack.c.h.b16 %v151
    %v358 = vunpack.c.l.b16 %v152
    %v359 = vunpack.c.h.b16 %v152
    %v360 = vunpack.c.l.b16 %v153
    %v361 = vunpack.c.h.b16 %v153
    %v362 = vunpack.c.l.b16 %v154
    %v363 = vunpack.c.h.b16 %v154
    %v364 = vunpack.c.l.b16 %v155
    %v365 = vunpack.c.h.b16 %v155
    %v366 = vunpack.c.l.b16 %v156
    %v367 = vunpack.c.h.b16 %v156
    %v368 = vunpack.c.l.b16 %v157
    %v369 = vunpack.c.h.b16 %v157
    %v370 = vunpack.c.l.b16 %v158
    %v371 = vunpack.c.h.b16 %v158
    %v372 = vunpack.c.l.b16 %v159
    %v373 = vunpack.c.h.b16 %v159
    %v374 = vpack.c.b16 %v250, %v246
    %v375 = vpack.c.b16 %v251, %v247
    %v376 = vpack.c.b16 %v252, %v248
    %v377 = vpack.c.b16 %v253, %v249
    %v378 = vpack.c.b16 %v258, %v254
    %v379 = vpack.c.b16 %v259, %v255
    %v380 = vpack.c.b16 %v260, %v256
    %v381 = vpack.c.b16 %v261, %v257
    %v382 = vpack.c.b16 %v266, %v262
    %v383 = vpack.c.b16 %v267, %v263
    %v384 = vpack.c.b16 %v268, %v264
    %v385 = vpack.c.b16 %v269, %v265
    %v386 = vpack.c.b16 %v274, %v270
    %v387 = vpack.c.b16 %v275, %v271
    %v388 = vpack.c.b16 %v276, %v272
    %v389 = vpack.c.b16 %v277, %v273
    %v390 = vpack.c.b16 %v282, %v278
    %v391 = vpack.c.b16 %v283, %v279
    %v392 = vpack.c.b16 %v284, %v280
    %v393 = vpack.c.b16 %v285, %v281
    %v394 = vpack.c.b16 %v290, %v286
    %v395 = vpack.c.b16 %v291, %v287
    %v396 = vpack.c.b16 %v292, %v288
    %v397 = vpack.c.b16 %v293, %v289
    %v398 = vpack.c.b16 %v298, %v294
    %v399 = vpack.c.b16 %v299, %v295
    %v400 = vpack.c.b16 %v300, %v296
    %v401 = vpack.c.b16 %v301, %v297
    %v402 = vpack.c.b16 %v306, %v302
    %v403 = vpack.c.b16 %v307, %v303
    %v404 = vpack.c.b16 %v308, %v304
    %v405 = vpack.c.b16 %v309, %v305
    %v406 = vpack.c.b16 %v314, %v310
    %v407 = vpack.c.b16 %v315, %v311
    %v408 = vpack.c.b16 %v316, %v312
    %v409 = vpack.c.b16 %v317, %v313
    %v410 = vpack.c.b16 %v322, %v318
    %v411 = vpack.c.b16 %v323, %v319
    %v412 = vpack.c.b16 %v324, %v320
    %v413 = vpack.c.b16 %v325, %v321
    %v414 = vpack.c.b16 %v330, %v326
    %v415 = vpack.c.b16 %v331, %v327
    %v416 = vpack.c.b16 %v332, %v328
    %v417 = vpack.c.b16 %v333, %v329
    %v418 = vpack.c.b16 %v338, %v334
    %v419 = vpack.c.b16 %v339, %v335
    %v420 = vpack.c.b16 %v340, %v336
    %v421 = vpack.c.b16 %v341, %v337
    %v422 = vpack.c.b16 %v346, %v342
    %v423 = vpack.c.b16 %v347, %v343
    %v424 = vpack.c.b16 %v348, %v344
    %v425 = vpack.c.b16 %v349, %v345
    %v426 = vpack.c.b16 %v354, %v350
    %v427 = vpack.c.b16 %v355, %v351
    %v428 = vpack.c.b16 %v356, %v352
    %v429 = vpack.c.b16 %v357, %v353
    %v430 = vpack.c.b16 %v362, %v358
    %v431 = vpack.c.b16 %v363, %v359
    %v432 = vpack.c.b16 %v364, %v360
    %v433 = vpack.c.b16 %v365, %v361
    %v434 = vpack.c.b16 %v370, %v366
    %v435 = vpack.c.b16 %v371, %v367
    %v436 = vpack.c.b16 %v372, %v368
    %v437 = vpack.c.b16 %v373, %v369
    %502 = vmatprep.subr.bf16.mxu0 %v403
    %503 = vmatpush1.bf16.msra.mxu0 %v402
    %504 = vmatprep.subr.bf16.mxu0 %v399
    %505 = vmatpush1.bf16.msra.mxu0 %v398
    %506 = vmatprep.subr.bf16.mxu0 %v395
    %507 = vmatpush1.bf16.msra.mxu0 %v394
    %508 = vmatprep.subr.bf16.mxu0 %v391
    %509 = vmatpush1.bf16.msra.mxu0 %v390
    %510 = vmatprep.subr.bf16.mxu0 %v387
    %511 = vmatpush1.bf16.msra.mxu0 %v386
    %512 = vmatprep.subr.bf16.mxu0 %v383
    %513 = vmatpush1.bf16.msra.mxu0 %v382
    %514 = vmatprep.subr.bf16.mxu0 %v379
    %515 = vmatpush1.bf16.msra.mxu0 %v378
    %516 = vmatprep.subr.bf16.mxu0 %v375
    %517 = vmatpush1.bf16.msra.mxu0 %v374
    %518 = vmatprep.subr.bf16.mxu0 %v435
    %519 = vmatpush2.bf16.msra.mxu0 %v434
    %520 = vmatprep.subr.bf16.mxu0 %v431
    %521 = vmatpush2.bf16.msra.mxu0 %v430
    %522 = vmatprep.subr.bf16.mxu0 %v427
    %523 = vmatpush2.bf16.msra.mxu0 %v426
    %524 = vmatprep.subr.bf16.mxu0 %v423
    %525 = vmatpush2.bf16.msra.mxu0 %v422
    %526 = vmatprep.subr.bf16.mxu0 %v419
    %527 = vmatpush2.bf16.msra.mxu0 %v418
    %528 = vmatprep.subr.bf16.mxu0 %v415
    %529 = vmatpush2.bf16.msra.mxu0 %v414
    %530 = vmatprep.subr.bf16.mxu0 %v411
    %531 = vmatpush2.bf16.msra.mxu0 %v410
    %532 = vmatprep.subr.bf16.mxu0 %v407
    %533 = vmatpush2.bf16.msra.mxu0 %v406
    %534 = vmatprep.mubr.bf16.mxu0 %v95
    %535 = vmatmul.mubr.bf16.gmra.mxu0 %v94
    %v536 = vpop.f32.mrf.mxu0
    %v537 = vadd.f32 %v165, %v536
    %v538 = vpop.f32.mrf.mxu0
    %v539 = vadd.f32 %v169, %v538
    %v540 = vpop.f32.mrf.mxu0
    %v541 = vpop.f32.mrf.mxu0
    %542 = vdwg.mxu0
    %543 = vmatprep.subr.bf16.mxu0 %v405
    %544 = vmatpush1.bf16.msra.mxu0 %v404
    %545 = vmatprep.subr.bf16.mxu0 %v401
    %546 = vmatpush1.bf16.msra.mxu0 %v400
    %547 = vmatprep.subr.bf16.mxu0 %v397
    %548 = vmatpush1.bf16.msra.mxu0 %v396
    %549 = vmatprep.subr.bf16.mxu0 %v393
    %550 = vmatpush1.bf16.msra.mxu0 %v392
    %551 = vmatprep.subr.bf16.mxu0 %v389
    %552 = vmatpush1.bf16.msra.mxu0 %v388
    %553 = vmatprep.subr.bf16.mxu0 %v385
    %554 = vmatpush1.bf16.msra.mxu0 %v384
    %555 = vmatprep.subr.bf16.mxu0 %v381
    %556 = vmatpush1.bf16.msra.mxu0 %v380
    %557 = vmatprep.subr.bf16.mxu0 %v377
    %558 = vmatpush1.bf16.msra.mxu0 %v376
    %559 = vmatprep.subr.bf16.mxu0 %v437
    %560 = vmatpush2.bf16.msra.mxu0 %v436
    %561 = vmatprep.subr.bf16.mxu0 %v433
    %562 = vmatpush2.bf16.msra.mxu0 %v432
    %563 = vmatprep.subr.bf16.mxu0 %v429
    %564 = vmatpush2.bf16.msra.mxu0 %v428
    %565 = vmatprep.subr.bf16.mxu0 %v425
    %566 = vmatpush2.bf16.msra.mxu0 %v424
    %567 = vmatprep.subr.bf16.mxu0 %v421
    %568 = vmatpush2.bf16.msra.mxu0 %v420
    %569 = vmatprep.subr.bf16.mxu0 %v417
    %570 = vmatpush2.bf16.msra.mxu0 %v416
    %571 = vmatprep.subr.bf16.mxu0 %v413
    %572 = vmatpush2.bf16.msra.mxu0 %v412
    %573 = vmatprep.subr.bf16.mxu0 %v409
    %574 = vmatpush2.bf16.msra.mxu0 %v408
    %575 = vmatprep.mubr.bf16.mxu0 %v95
    %576 = vmatmul.mubr.bf16.gmra.mxu0 %v94
    %v577 = vpop.f32.mrf.mxu0
    %v578 = vadd.f32 %v173, %v577
    %v579 = vpop.f32.mrf.mxu0
    %v580 = vadd.f32 %v177, %v579
    %v581 = vpop.f32.mrf.mxu0
    %v582 = vpop.f32.mrf.mxu0
    %583 = vdwg.mxu0
    %v584 = vmul.f32 %v537, 0.5
    %v585 = vmul.f32 %v539, 0.5
    %v586 = vmul.f32 %v578, 0.5
    %v587 = vmul.f32 %v580, 0.5
    %v588 = vtanh.pop %v584
    %v589 = vtanh.pop %v585
    %v590 = vtanh.pop %v586
    %v591 = vtanh.pop %v587
    %v592 = vmul.f32 %v588, 0.5
    %v593 = vmul.f32 %v589, 0.5
    %v594 = vmul.f32 %v590, 0.5
    %v595 = vmul.f32 %v591, 0.5
    %v596 = vadd.f32 %v592, 0.5
    %v597 = vadd.f32 %v593, 0.5
    %v598 = vadd.f32 %v594, 0.5
    %v599 = vadd.f32 %v595, 0.5
    %v600 = vpack.c.bf16 %v596, %v596
    %v601 = vpack.c.bf16 %v597, %v597
    %v602 = vpack.c.bf16 %v598, %v598
    %v603 = vpack.c.bf16 %v599, %v599
    %v604 = vld [vmem:[#allocation8] sm:$0xff]
    %v605 = vld [vmem:[#allocation8 + $0x8] sm:$0xff]
    %v606 = vld [vmem:[#allocation8 + $0x10] sm:$0xff]
    %v607 = vld [vmem:[#allocation8 + $0x18] sm:$0xff]
    %v608 = vld [vmem:[#allocation8 + $0x20] sm:$0xff]
    %v609 = vld [vmem:[#allocation8 + $0x28] sm:$0xff]
    %v610 = vld [vmem:[#allocation8 + $0x30] sm:$0xff]
    %v611 = vld [vmem:[#allocation8 + $0x38] sm:$0xff]
    %v612 = vld [vmem:[#allocation8 + $0x40] sm:$0xff]
    %v613 = vld [vmem:[#allocation8 + $0x48] sm:$0xff]
    %v614 = vld [vmem:[#allocation8 + $0x50] sm:$0xff]
    %v615 = vld [vmem:[#allocation8 + $0x58] sm:$0xff]
    %v616 = vld [vmem:[#allocation8 + $0x60] sm:$0xff]
    %v617 = vld [vmem:[#allocation8 + $0x68] sm:$0xff]
    %v618 = vld [vmem:[#allocation8 + $0x70] sm:$0xff]
    %v619 = vld [vmem:[#allocation8 + $0x78] sm:$0xff]
    %v620 = vld [vmem:[#allocation8 + $0x80] sm:$0xff]
    %v621 = vld [vmem:[#allocation8 + $0x88] sm:$0xff]
    %v622 = vld [vmem:[#allocation8 + $0x90] sm:$0xff]
    %v623 = vld [vmem:[#allocation8 + $0x98] sm:$0xff]
    %v624 = vld [vmem:[#allocation8 + $0xa0] sm:$0xff]
    %v625 = vld [vmem:[#allocation8 + $0xa8] sm:$0xff]
    %v626 = vld [vmem:[#allocation8 + $0xb0] sm:$0xff]
    %v627 = vld [vmem:[#allocation8 + $0xb8] sm:$0xff]
    %v628 = vld [vmem:[#allocation8 + $0xc0] sm:$0xff]
    %v629 = vld [vmem:[#allocation8 + $0xc8] sm:$0xff]
    %v630 = vld [vmem:[#allocation8 + $0xd0] sm:$0xff]
    %v631 = vld [vmem:[#allocation8 + $0xd8] sm:$0xff]
    %v632 = vld [vmem:[#allocation8 + $0xe0] sm:$0xff]
    %v633 = vld [vmem:[#allocation8 + $0xe8] sm:$0xff]
    %v634 = vld [vmem:[#allocation8 + $0xf0] sm:$0xff]
    %v635 = vld [vmem:[#allocation8 + $0xf8] sm:$0xff]
    %v636 = vld [vmem:[#allocation8 + $0x100] sm:$0xff]
    %v637 = vld [vmem:[#allocation8 + $0x108] sm:$0xff]
    %v638 = vld [vmem:[#allocation8 + $0x110] sm:$0xff]
    %v639 = vld [vmem:[#allocation8 + $0x118] sm:$0xff]
    %v640 = vld [vmem:[#allocation8 + $0x120] sm:$0xff]
    %v641 = vld [vmem:[#allocation8 + $0x128] sm:$0xff]
    %v642 = vld [vmem:[#allocation8 + $0x130] sm:$0xff]
    %v643 = vld [vmem:[#allocation8 + $0x138] sm:$0xff]
    %v644 = vld [vmem:[#allocation8 + $0x140] sm:$0xff]
    %v645 = vld [vmem:[#allocation8 + $0x148] sm:$0xff]
    %v646 = vld [vmem:[#allocation8 + $0x150] sm:$0xff]
    %v647 = vld [vmem:[#allocation8 + $0x158] sm:$0xff]
    %v648 = vld [vmem:[#allocation8 + $0x160] sm:$0xff]
    %v649 = vld [vmem:[#allocation8 + $0x168] sm:$0xff]
    %v650 = vld [vmem:[#allocation8 + $0x170] sm:$0xff]
    %v651 = vld [vmem:[#allocation8 + $0x178] sm:$0xff]
    %v652 = vld [vmem:[#allocation8 + $0x180] sm:$0xff]
    %v653 = vld [vmem:[#allocation8 + $0x188] sm:$0xff]
    %v654 = vld [vmem:[#allocation8 + $0x190] sm:$0xff]
    %v655 = vld [vmem:[#allocation8 + $0x198] sm:$0xff]
    %v656 = vld [vmem:[#allocation8 + $0x1a0] sm:$0xff]
    %v657 = vld [vmem:[#allocation8 + $0x1a8] sm:$0xff]
    %v658 = vld [vmem:[#allocation8 + $0x1b0] sm:$0xff]
    %v659 = vld [vmem:[#allocation8 + $0x1b8] sm:$0xff]
    %v660 = vld [vmem:[#allocation8 + $0x1c0] sm:$0xff]
    %v661 = vld [vmem:[#allocation8 + $0x1c8] sm:$0xff]
    %v662 = vld [vmem:[#allocation8 + $0x1d0] sm:$0xff]
    %v663 = vld [vmem:[#allocation8 + $0x1d8] sm:$0xff]
    %v664 = vld [vmem:[#allocation8 + $0x1e0] sm:$0xff]
    %v665 = vld [vmem:[#allocation8 + $0x1e8] sm:$0xff]
    %v666 = vld [vmem:[#allocation8 + $0x1f0] sm:$0xff]
    %v667 = vld [vmem:[#allocation8 + $0x1f8] sm:$0xff]
    %v668 = vld [vmem:[#allocation8 + $0x200] sm:$0xff]
    %v669 = vld [vmem:[#allocation8 + $0x208] sm:$0xff]
    %v670 = vld [vmem:[#allocation8 + $0x210] sm:$0xff]
    %v671 = vld [vmem:[#allocation8 + $0x218] sm:$0xff]
    %v672 = vld [vmem:[#allocation8 + $0x220] sm:$0xff]
    %v673 = vld [vmem:[#allocation8 + $0x228] sm:$0xff]
    %v674 = vld [vmem:[#allocation8 + $0x230] sm:$0xff]
    %v675 = vld [vmem:[#allocation8 + $0x238] sm:$0xff]
    %v676 = vld [vmem:[#allocation8 + $0x240] sm:$0xff]
    %v677 = vld [vmem:[#allocation8 + $0x248] sm:$0xff]
    %v678 = vld [vmem:[#allocation8 + $0x250] sm:$0xff]
    %v679 = vld [vmem:[#allocation8 + $0x258] sm:$0xff]
    %v680 = vld [vmem:[#allocation8 + $0x260] sm:$0xff]
    %v681 = vld [vmem:[#allocation8 + $0x268] sm:$0xff]
    %v682 = vld [vmem:[#allocation8 + $0x270] sm:$0xff]
    %v683 = vld [vmem:[#allocation8 + $0x278] sm:$0xff]
    %v684 = vld [vmem:[#allocation8 + $0x280] sm:$0xff]
    %v685 = vld [vmem:[#allocation8 + $0x288] sm:$0xff]
    %v686 = vld [vmem:[#allocation8 + $0x290] sm:$0xff]
    %v687 = vld [vmem:[#allocation8 + $0x298] sm:$0xff]
    %v688 = vld [vmem:[#allocation8 + $0x2a0] sm:$0xff]
    %v689 = vld [vmem:[#allocation8 + $0x2a8] sm:$0xff]
    %v690 = vld [vmem:[#allocation8 + $0x2b0] sm:$0xff]
    %v691 = vld [vmem:[#allocation8 + $0x2b8] sm:$0xff]
    %v692 = vld [vmem:[#allocation8 + $0x2c0] sm:$0xff]
    %v693 = vld [vmem:[#allocation8 + $0x2c8] sm:$0xff]
    %v694 = vld [vmem:[#allocation8 + $0x2d0] sm:$0xff]
    %v695 = vld [vmem:[#allocation8 + $0x2d8] sm:$0xff]
    %v696 = vld [vmem:[#allocation8 + $0x2e0] sm:$0xff]
    %v697 = vld [vmem:[#allocation8 + $0x2e8] sm:$0xff]
    %v698 = vld [vmem:[#allocation8 + $0x2f0] sm:$0xff]
    %v699 = vld [vmem:[#allocation8 + $0x2f8] sm:$0xff]
    %v700 = vld [vmem:[#allocation8 + $0x300] sm:$0xff]
    %v701 = vld [vmem:[#allocation8 + $0x308] sm:$0xff]
    %v702 = vld [vmem:[#allocation8 + $0x310] sm:$0xff]
    %v703 = vld [vmem:[#allocation8 + $0x318] sm:$0xff]
    %v704 = vld [vmem:[#allocation8 + $0x320] sm:$0xff]
    %v705 = vld [vmem:[#allocation8 + $0x328] sm:$0xff]
    %v706 = vld [vmem:[#allocation8 + $0x330] sm:$0xff]
    %v707 = vld [vmem:[#allocation8 + $0x338] sm:$0xff]
    %v708 = vld [vmem:[#allocation8 + $0x340] sm:$0xff]
    %v709 = vld [vmem:[#allocation8 + $0x348] sm:$0xff]
    %v710 = vld [vmem:[#allocation8 + $0x350] sm:$0xff]
    %v711 = vld [vmem:[#allocation8 + $0x358] sm:$0xff]
    %v712 = vld [vmem:[#allocation8 + $0x360] sm:$0xff]
    %v713 = vld [vmem:[#allocation8 + $0x368] sm:$0xff]
    %v714 = vld [vmem:[#allocation8 + $0x370] sm:$0xff]
    %v715 = vld [vmem:[#allocation8 + $0x378] sm:$0xff]
    %v716 = vld [vmem:[#allocation8 + $0x380] sm:$0xff]
    %v717 = vld [vmem:[#allocation8 + $0x388] sm:$0xff]
    %v718 = vld [vmem:[#allocation8 + $0x390] sm:$0xff]
    %v719 = vld [vmem:[#allocation8 + $0x398] sm:$0xff]
    %v720 = vld [vmem:[#allocation8 + $0x3a0] sm:$0xff]
    %v721 = vld [vmem:[#allocation8 + $0x3a8] sm:$0xff]
    %v722 = vld [vmem:[#allocation8 + $0x3b0] sm:$0xff]
    %v723 = vld [vmem:[#allocation8 + $0x3b8] sm:$0xff]
    %v724 = vld [vmem:[#allocation8 + $0x3c0] sm:$0xff]
    %v725 = vld [vmem:[#allocation8 + $0x3c8] sm:$0xff]
    %v726 = vld [vmem:[#allocation8 + $0x3d0] sm:$0xff]
    %v727 = vld [vmem:[#allocation8 + $0x3d8] sm:$0xff]
    %v728 = vld [vmem:[#allocation8 + $0x3e0] sm:$0xff]
    %v729 = vld [vmem:[#allocation8 + $0x3e8] sm:$0xff]
    %v730 = vld [vmem:[#allocation8 + $0x3f0] sm:$0xff]
    %v731 = vld [vmem:[#allocation8 + $0x3f8] sm:$0xff]
    %v732 = vld [vmem:[%s4] sm:$0xf]
    %v734 = vlaneseq
    %v735 = vshrl.u32 %v734, 7
    %v736 = vsub.s32 0, %v735
    %v737 = vrot.slane %v732, %v736
    %v738 = vlaneseq
    %v739 = vshrl.u32 %v738, 7
    %v740 = vsub.s32 1, %v739
    %v741 = vrot.slane %v732, %v740
    %v742 = vlaneseq
    %v743 = vshrl.u32 %v742, 7
    %v744 = vsub.s32 2, %v743
    %v745 = vrot.slane %v732, %v744
    %v746 = vlaneseq
    %v747 = vshrl.u32 %v746, 7
    %v748 = vsub.s32 3, %v747
    %v749 = vrot.slane %v732, %v748
    %v882 = vunpack.c.l.b16 %v604
    %v883 = vunpack.c.h.b16 %v604
    %v884 = vunpack.c.l.b16 %v605
    %v885 = vunpack.c.h.b16 %v605
    %v886 = vunpack.c.l.b16 %v606
    %v887 = vunpack.c.h.b16 %v606
    %v888 = vunpack.c.l.b16 %v607
    %v889 = vunpack.c.h.b16 %v607
    %v890 = vunpack.c.l.b16 %v608
    %v891 = vunpack.c.h.b16 %v608
    %v892 = vunpack.c.l.b16 %v609
    %v893 = vunpack.c.h.b16 %v609
    %v894 = vunpack.c.l.b16 %v610
    %v895 = vunpack.c.h.b16 %v610
    %v896 = vunpack.c.l.b16 %v611
    %v897 = vunpack.c.h.b16 %v611
    %v898 = vunpack.c.l.b16 %v612
    %v899 = vunpack.c.h.b16 %v612
    %v900 = vunpack.c.l.b16 %v613
    %v901 = vunpack.c.h.b16 %v613
    %v902 = vunpack.c.l.b16 %v614
    %v903 = vunpack.c.h.b16 %v614
    %v904 = vunpack.c.l.b16 %v615
    %v905 = vunpack.c.h.b16 %v615
    %v906 = vunpack.c.l.b16 %v616
    %v907 = vunpack.c.h.b16 %v616
    %v908 = vunpack.c.l.b16 %v617
    %v909 = vunpack.c.h.b16 %v617
    %v910 = vunpack.c.l.b16 %v618
    %v911 = vunpack.c.h.b16 %v618
    %v912 = vunpack.c.l.b16 %v619
    %v913 = vunpack.c.h.b16 %v619
    %v914 = vunpack.c.l.b16 %v620
    %v915 = vunpack.c.h.b16 %v620
    %v916 = vunpack.c.l.b16 %v621
    %v917 = vunpack.c.h.b16 %v621
    %v918 = vunpack.c.l.b16 %v622
    %v919 = vunpack.c.h.b16 %v622
    %v920 = vunpack.c.l.b16 %v623
    %v921 = vunpack.c.h.b16 %v623
    %v922 = vunpack.c.l.b16 %v624
    %v923 = vunpack.c.h.b16 %v624
    %v924 = vunpack.c.l.b16 %v625
    %v925 = vunpack.c.h.b16 %v625
    %v926 = vunpack.c.l.b16 %v626
    %v927 = vunpack.c.h.b16 %v626
    %v928 = vunpack.c.l.b16 %v627
    %v929 = vunpack.c.h.b16 %v627
    %v930 = vunpack.c.l.b16 %v628
    %v931 = vunpack.c.h.b16 %v628
    %v932 = vunpack.c.l.b16 %v629
    %v933 = vunpack.c.h.b16 %v629
    %v934 = vunpack.c.l.b16 %v630
    %v935 = vunpack.c.h.b16 %v630
    %v936 = vunpack.c.l.b16 %v631
    %v937 = vunpack.c.h.b16 %v631
    %v938 = vunpack.c.l.b16 %v632
    %v939 = vunpack.c.h.b16 %v632
    %v940 = vunpack.c.l.b16 %v633
    %v941 = vunpack.c.h.b16 %v633
    %v942 = vunpack.c.l.b16 %v634
    %v943 = vunpack.c.h.b16 %v634
    %v944 = vunpack.c.l.b16 %v635
    %v945 = vunpack.c.h.b16 %v635
    %v946 = vunpack.c.l.b16 %v636
    %v947 = vunpack.c.h.b16 %v636
    %v948 = vunpack.c.l.b16 %v637
    %v949 = vunpack.c.h.b16 %v637
    %v950 = vunpack.c.l.b16 %v638
    %v951 = vunpack.c.h.b16 %v638
    %v952 = vunpack.c.l.b16 %v639
    %v953 = vunpack.c.h.b16 %v639
    %v954 = vunpack.c.l.b16 %v640
    %v955 = vunpack.c.h.b16 %v640
    %v956 = vunpack.c.l.b16 %v641
    %v957 = vunpack.c.h.b16 %v641
    %v958 = vunpack.c.l.b16 %v642
    %v959 = vunpack.c.h.b16 %v642
    %v960 = vunpack.c.l.b16 %v643
    %v961 = vunpack.c.h.b16 %v643
    %v962 = vunpack.c.l.b16 %v644
    %v963 = vunpack.c.h.b16 %v644
    %v964 = vunpack.c.l.b16 %v645
    %v965 = vunpack.c.h.b16 %v645
    %v966 = vunpack.c.l.b16 %v646
    %v967 = vunpack.c.h.b16 %v646
    %v968 = vunpack.c.l.b16 %v647
    %v969 = vunpack.c.h.b16 %v647
    %v970 = vunpack.c.l.b16 %v648
    %v971 = vunpack.c.h.b16 %v648
    %v972 = vunpack.c.l.b16 %v649
    %v973 = vunpack.c.h.b16 %v649
    %v974 = vunpack.c.l.b16 %v650
    %v975 = vunpack.c.h.b16 %v650
    %v976 = vunpack.c.l.b16 %v651
    %v977 = vunpack.c.h.b16 %v651
    %v978 = vunpack.c.l.b16 %v652
    %v979 = vunpack.c.h.b16 %v652
    %v980 = vunpack.c.l.b16 %v653
    %v981 = vunpack.c.h.b16 %v653
    %v982 = vunpack.c.l.b16 %v654
    %v983 = vunpack.c.h.b16 %v654
    %v984 = vunpack.c.l.b16 %v655
    %v985 = vunpack.c.h.b16 %v655
    %v986 = vunpack.c.l.b16 %v656
    %v987 = vunpack.c.h.b16 %v656
    %v988 = vunpack.c.l.b16 %v657
    %v989 = vunpack.c.h.b16 %v657
    %v990 = vunpack.c.l.b16 %v658
    %v991 = vunpack.c.h.b16 %v658
    %v992 = vunpack.c.l.b16 %v659
    %v993 = vunpack.c.h.b16 %v659
    %v994 = vunpack.c.l.b16 %v660
    %v995 = vunpack.c.h.b16 %v660
    %v996 = vunpack.c.l.b16 %v661
    %v997 = vunpack.c.h.b16 %v661
    %v998 = vunpack.c.l.b16 %v662
    %v999 = vunpack.c.h.b16 %v662
    %v1000 = vunpack.c.l.b16 %v663
    %v1001 = vunpack.c.h.b16 %v663
    %v1002 = vunpack.c.l.b16 %v664
    %v1003 = vunpack.c.h.b16 %v664
    %v1004 = vunpack.c.l.b16 %v665
    %v1005 = vunpack.c.h.b16 %v665
    %v1006 = vunpack.c.l.b16 %v666
    %v1007 = vunpack.c.h.b16 %v666
    %v1008 = vunpack.c.l.b16 %v667
    %v1009 = vunpack.c.h.b16 %v667
    %v1010 = vunpack.c.l.b16 %v668
    %v1011 = vunpack.c.h.b16 %v668
    %v1012 = vunpack.c.l.b16 %v669
    %v1013 = vunpack.c.h.b16 %v669
    %v1014 = vunpack.c.l.b16 %v670
    %v1015 = vunpack.c.h.b16 %v670
    %v1016 = vunpack.c.l.b16 %v671
    %v1017 = vunpack.c.h.b16 %v671
    %v1018 = vunpack.c.l.b16 %v672
    %v1019 = vunpack.c.h.b16 %v672
    %v1020 = vunpack.c.l.b16 %v673
    %v1021 = vunpack.c.h.b16 %v673
    %v1022 = vunpack.c.l.b16 %v674
    %v1023 = vunpack.c.h.b16 %v674
    %v1024 = vunpack.c.l.b16 %v675
    %v1025 = vunpack.c.h.b16 %v675
    %v1026 = vunpack.c.l.b16 %v676
    %v1027 = vunpack.c.h.b16 %v676
    %v1028 = vunpack.c.l.b16 %v677
    %v1029 = vunpack.c.h.b16 %v677
    %v1030 = vunpack.c.l.b16 %v678
    %v1031 = vunpack.c.h.b16 %v678
    %v1032 = vunpack.c.l.b16 %v679
    %v1033 = vunpack.c.h.b16 %v679
    %v1034 = vunpack.c.l.b16 %v680
    %v1035 = vunpack.c.h.b16 %v680
    %v1036 = vunpack.c.l.b16 %v681
    %v1037 = vunpack.c.h.b16 %v681
    %v1038 = vunpack.c.l.b16 %v682
    %v1039 = vunpack.c.h.b16 %v682
    %v1040 = vunpack.c.l.b16 %v683
    %v1041 = vunpack.c.h.b16 %v683
    %v1042 = vunpack.c.l.b16 %v684
    %v1043 = vunpack.c.h.b16 %v684
    %v1044 = vunpack.c.l.b16 %v685
    %v1045 = vunpack.c.h.b16 %v685
    %v1046 = vunpack.c.l.b16 %v686
    %v1047 = vunpack.c.h.b16 %v686
    %v1048 = vunpack.c.l.b16 %v687
    %v1049 = vunpack.c.h.b16 %v687
    %v1050 = vunpack.c.l.b16 %v688
    %v1051 = vunpack.c.h.b16 %v688
    %v1052 = vunpack.c.l.b16 %v689
    %v1053 = vunpack.c.h.b16 %v689
    %v1054 = vunpack.c.l.b16 %v690
    %v1055 = vunpack.c.h.b16 %v690
    %v1056 = vunpack.c.l.b16 %v691
    %v1057 = vunpack.c.h.b16 %v691
    %v1058 = vunpack.c.l.b16 %v692
    %v1059 = vunpack.c.h.b16 %v692
    %v1060 = vunpack.c.l.b16 %v693
    %v1061 = vunpack.c.h.b16 %v693
    %v1062 = vunpack.c.l.b16 %v694
    %v1063 = vunpack.c.h.b16 %v694
    %v1064 = vunpack.c.l.b16 %v695
    %v1065 = vunpack.c.h.b16 %v695
    %v1066 = vunpack.c.l.b16 %v696
    %v1067 = vunpack.c.h.b16 %v696
    %v1068 = vunpack.c.l.b16 %v697
    %v1069 = vunpack.c.h.b16 %v697
    %v1070 = vunpack.c.l.b16 %v698
    %v1071 = vunpack.c.h.b16 %v698
    %v1072 = vunpack.c.l.b16 %v699
    %v1073 = vunpack.c.h.b16 %v699
    %v1074 = vunpack.c.l.b16 %v700
    %v1075 = vunpack.c.h.b16 %v700
    %v1076 = vunpack.c.l.b16 %v701
    %v1077 = vunpack.c.h.b16 %v701
    %v1078 = vunpack.c.l.b16 %v702
    %v1079 = vunpack.c.h.b16 %v702
    %v1080 = vunpack.c.l.b16 %v703
    %v1081 = vunpack.c.h.b16 %v703
    %v1082 = vunpack.c.l.b16 %v704
    %v1083 = vunpack.c.h.b16 %v704
    %v1084 = vunpack.c.l.b16 %v705
    %v1085 = vunpack.c.h.b16 %v705
    %v1086 = vunpack.c.l.b16 %v706
    %v1087 = vunpack.c.h.b16 %v706
    %v1088 = vunpack.c.l.b16 %v707
    %v1089 = vunpack.c.h.b16 %v707
    %v1090 = vunpack.c.l.b16 %v708
    %v1091 = vunpack.c.h.b16 %v708
    %v1092 = vunpack.c.l.b16 %v709
    %v1093 = vunpack.c.h.b16 %v709
    %v1094 = vunpack.c.l.b16 %v710
    %v1095 = vunpack.c.h.b16 %v710
    %v1096 = vunpack.c.l.b16 %v711
    %v1097 = vunpack.c.h.b16 %v711
    %v1098 = vunpack.c.l.b16 %v712
    %v1099 = vunpack.c.h.b16 %v712
    %v1100 = vunpack.c.l.b16 %v713
    %v1101 = vunpack.c.h.b16 %v713
    %v1102 = vunpack.c.l.b16 %v714
    %v1103 = vunpack.c.h.b16 %v714
    %v1104 = vunpack.c.l.b16 %v715
    %v1105 = vunpack.c.h.b16 %v715
    %v1106 = vunpack.c.l.b16 %v716
    %v1107 = vunpack.c.h.b16 %v716
    %v1108 = vunpack.c.l.b16 %v717
    %v1109 = vunpack.c.h.b16 %v717
    %v1110 = vunpack.c.l.b16 %v718
    %v1111 = vunpack.c.h.b16 %v718
    %v1112 = vunpack.c.l.b16 %v719
    %v1113 = vunpack.c.h.b16 %v719
    %v1114 = vunpack.c.l.b16 %v720
    %v1115 = vunpack.c.h.b16 %v720
    %v1116 = vunpack.c.l.b16 %v721
    %v1117 = vunpack.c.h.b16 %v721
    %v1118 = vunpack.c.l.b16 %v722
    %v1119 = vunpack.c.h.b16 %v722
    %v1120 = vunpack.c.l.b16 %v723
    %v1121 = vunpack.c.h.b16 %v723
    %v1122 = vunpack.c.l.b16 %v724
    %v1123 = vunpack.c.h.b16 %v724
    %v1124 = vunpack.c.l.b16 %v725
    %v1125 = vunpack.c.h.b16 %v725
    %v1126 = vunpack.c.l.b16 %v726
    %v1127 = vunpack.c.h.b16 %v726
    %v1128 = vunpack.c.l.b16 %v727
    %v1129 = vunpack.c.h.b16 %v727
    %v1130 = vunpack.c.l.b16 %v728
    %v1131 = vunpack.c.h.b16 %v728
    %v1132 = vunpack.c.l.b16 %v729
    %v1133 = vunpack.c.h.b16 %v729
    %v1134 = vunpack.c.l.b16 %v730
    %v1135 = vunpack.c.h.b16 %v730
    %v1136 = vunpack.c.l.b16 %v731
    %v1137 = vunpack.c.h.b16 %v731
    %v1138 = vpack.c.b16 %v886, %v882
    %v1139 = vpack.c.b16 %v887, %v883
    %v1140 = vpack.c.b16 %v888, %v884
    %v1141 = vpack.c.b16 %v889, %v885
    %v1142 = vpack.c.b16 %v894, %v890
    %v1143 = vpack.c.b16 %v895, %v891
    %v1144 = vpack.c.b16 %v896, %v892
    %v1145 = vpack.c.b16 %v897, %v893
    %v1146 = vpack.c.b16 %v902, %v898
    %v1147 = vpack.c.b16 %v903, %v899
    %v1148 = vpack.c.b16 %v904, %v900
    %v1149 = vpack.c.b16 %v905, %v901
    %v1150 = vpack.c.b16 %v910, %v906
    %v1151 = vpack.c.b16 %v911, %v907
    %v1152 = vpack.c.b16 %v912, %v908
    %v1153 = vpack.c.b16 %v913, %v909
    %v1154 = vpack.c.b16 %v918, %v914
    %v1155 = vpack.c.b16 %v919, %v915
    %v1156 = vpack.c.b16 %v920, %v916
    %v1157 = vpack.c.b16 %v921, %v917
    %v1158 = vpack.c.b16 %v926, %v922
    %v1159 = vpack.c.b16 %v927, %v923
    %v1160 = vpack.c.b16 %v928, %v924
    %v1161 = vpack.c.b16 %v929, %v925
    %v1162 = vpack.c.b16 %v934, %v930
    %v1163 = vpack.c.b16 %v935, %v931
    %v1164 = vpack.c.b16 %v936, %v932
    %v1165 = vpack.c.b16 %v937, %v933
    %v1166 = vpack.c.b16 %v942, %v938
    %v1167 = vpack.c.b16 %v943, %v939
    %v1168 = vpack.c.b16 %v944, %v940
    %v1169 = vpack.c.b16 %v945, %v941
    %v1170 = vpack.c.b16 %v950, %v946
    %v1171 = vpack.c.b16 %v951, %v947
    %v1172 = vpack.c.b16 %v952, %v948
    %v1173 = vpack.c.b16 %v953, %v949
    %v1174 = vpack.c.b16 %v958, %v954
    %v1175 = vpack.c.b16 %v959, %v955
    %v1176 = vpack.c.b16 %v960, %v956
    %v1177 = vpack.c.b16 %v961, %v957
    %v1178 = vpack.c.b16 %v966, %v962
    %v1179 = vpack.c.b16 %v967, %v963
    %v1180 = vpack.c.b16 %v968, %v964
    %v1181 = vpack.c.b16 %v969, %v965
    %v1182 = vpack.c.b16 %v974, %v970
    %v1183 = vpack.c.b16 %v975, %v971
    %v1184 = vpack.c.b16 %v976, %v972
    %v1185 = vpack.c.b16 %v977, %v973
    %v1186 = vpack.c.b16 %v982, %v978
    %v1187 = vpack.c.b16 %v983, %v979
    %v1188 = vpack.c.b16 %v984, %v980
    %v1189 = vpack.c.b16 %v985, %v981
    %v1190 = vpack.c.b16 %v990, %v986
    %v1191 = vpack.c.b16 %v991, %v987
    %v1192 = vpack.c.b16 %v992, %v988
    %v1193 = vpack.c.b16 %v993, %v989
    %v1194 = vpack.c.b16 %v998, %v994
    %v1195 = vpack.c.b16 %v999, %v995
    %v1196 = vpack.c.b16 %v1000, %v996
    %v1197 = vpack.c.b16 %v1001, %v997
    %v1198 = vpack.c.b16 %v1006, %v1002
    %v1199 = vpack.c.b16 %v1007, %v1003
    %v1200 = vpack.c.b16 %v1008, %v1004
    %v1201 = vpack.c.b16 %v1009, %v1005
    %v1202 = vpack.c.b16 %v1014, %v1010
    %v1203 = vpack.c.b16 %v1015, %v1011
    %v1204 = vpack.c.b16 %v1016, %v1012
    %v1205 = vpack.c.b16 %v1017, %v1013
    %v1206 = vpack.c.b16 %v1022, %v1018
    %v1207 = vpack.c.b16 %v1023, %v1019
    %v1208 = vpack.c.b16 %v1024, %v1020
    %v1209 = vpack.c.b16 %v1025, %v1021
    %v1210 = vpack.c.b16 %v1030, %v1026
    %v1211 = vpack.c.b16 %v1031, %v1027
    %v1212 = vpack.c.b16 %v1032, %v1028
    %v1213 = vpack.c.b16 %v1033, %v1029
    %v1214 = vpack.c.b16 %v1038, %v1034
    %v1215 = vpack.c.b16 %v1039, %v1035
    %v1216 = vpack.c.b16 %v1040, %v1036
    %v1217 = vpack.c.b16 %v1041, %v1037
    %v1218 = vpack.c.b16 %v1046, %v1042
    %v1219 = vpack.c.b16 %v1047, %v1043
    %v1220 = vpack.c.b16 %v1048, %v1044
    %v1221 = vpack.c.b16 %v1049, %v1045
    %v1222 = vpack.c.b16 %v1054, %v1050
    %v1223 = vpack.c.b16 %v1055, %v1051
    %v1224 = vpack.c.b16 %v1056, %v1052
    %v1225 = vpack.c.b16 %v1057, %v1053
    %v1226 = vpack.c.b16 %v1062, %v1058
    %v1227 = vpack.c.b16 %v1063, %v1059
    %v1228 = vpack.c.b16 %v1064, %v1060
    %v1229 = vpack.c.b16 %v1065, %v1061
    %v1230 = vpack.c.b16 %v1070, %v1066
    %v1231 = vpack.c.b16 %v1071, %v1067
    %v1232 = vpack.c.b16 %v1072, %v1068
    %v1233 = vpack.c.b16 %v1073, %v1069
    %v1234 = vpack.c.b16 %v1078, %v1074
    %v1235 = vpack.c.b16 %v1079, %v1075
    %v1236 = vpack.c.b16 %v1080, %v1076
    %v1237 = vpack.c.b16 %v1081, %v1077
    %v1238 = vpack.c.b16 %v1086, %v1082
    %v1239 = vpack.c.b16 %v1087, %v1083
    %v1240 = vpack.c.b16 %v1088, %v1084
    %v1241 = vpack.c.b16 %v1089, %v1085
    %v1242 = vpack.c.b16 %v1094, %v1090
    %v1243 = vpack.c.b16 %v1095, %v1091
    %v1244 = vpack.c.b16 %v1096, %v1092
    %v1245 = vpack.c.b16 %v1097, %v1093
    %v1246 = vpack.c.b16 %v1102, %v1098
    %v1247 = vpack.c.b16 %v1103, %v1099
    %v1248 = vpack.c.b16 %v1104, %v1100
    %v1249 = vpack.c.b16 %v1105, %v1101
    %v1250 = vpack.c.b16 %v1110, %v1106
    %v1251 = vpack.c.b16 %v1111, %v1107
    %v1252 = vpack.c.b16 %v1112, %v1108
    %v1253 = vpack.c.b16 %v1113, %v1109
    %v1254 = vpack.c.b16 %v1118, %v1114
    %v1255 = vpack.c.b16 %v1119, %v1115
    %v1256 = vpack.c.b16 %v1120, %v1116
    %v1257 = vpack.c.b16 %v1121, %v1117
    %v1258 = vpack.c.b16 %v1126, %v1122
    %v1259 = vpack.c.b16 %v1127, %v1123
    %v1260 = vpack.c.b16 %v1128, %v1124
    %v1261 = vpack.c.b16 %v1129, %v1125
    %v1262 = vpack.c.b16 %v1134, %v1130
    %v1263 = vpack.c.b16 %v1135, %v1131
    %v1264 = vpack.c.b16 %v1136, %v1132
    %v1265 = vpack.c.b16 %v1137, %v1133
    %1394 = vmatprep.subr.bf16.mxu0 %v1167
    %1395 = vmatpush1.bf16.msra.mxu0 %v1166
    %1396 = vmatprep.subr.bf16.mxu0 %v1163
    %1397 = vmatpush1.bf16.msra.mxu0 %v1162
    %1398 = vmatprep.subr.bf16.mxu0 %v1159
    %1399 = vmatpush1.bf16.msra.mxu0 %v1158
    %1400 = vmatprep.subr.bf16.mxu0 %v1155
    %1401 = vmatpush1.bf16.msra.mxu0 %v1154
    %1402 = vmatprep.subr.bf16.mxu0 %v1151
    %1403 = vmatpush1.bf16.msra.mxu0 %v1150
    %1404 = vmatprep.subr.bf16.mxu0 %v1147
    %1405 = vmatpush1.bf16.msra.mxu0 %v1146
    %1406 = vmatprep.subr.bf16.mxu0 %v1143
    %1407 = vmatpush1.bf16.msra.mxu0 %v1142
    %1408 = vmatprep.subr.bf16.mxu0 %v1139
    %1409 = vmatpush1.bf16.msra.mxu0 %v1138
    %1410 = vmatprep.subr.bf16.mxu0 %v1199
    %1411 = vmatpush2.bf16.msra.mxu0 %v1198
    %1412 = vmatprep.subr.bf16.mxu0 %v1195
    %1413 = vmatpush2.bf16.msra.mxu0 %v1194
    %1414 = vmatprep.subr.bf16.mxu0 %v1191
    %1415 = vmatpush2.bf16.msra.mxu0 %v1190
    %1416 = vmatprep.subr.bf16.mxu0 %v1187
    %1417 = vmatpush2.bf16.msra.mxu0 %v1186
    %1418 = vmatprep.subr.bf16.mxu0 %v1183
    %1419 = vmatpush2.bf16.msra.mxu0 %v1182
    %1420 = vmatprep.subr.bf16.mxu0 %v1179
    %1421 = vmatpush2.bf16.msra.mxu0 %v1178
    %1422 = vmatprep.subr.bf16.mxu0 %v1175
    %1423 = vmatpush2.bf16.msra.mxu0 %v1174
    %1424 = vmatprep.subr.bf16.mxu0 %v1171
    %1425 = vmatpush2.bf16.msra.mxu0 %v1170
    %1426 = vmatprep.mubr.bf16.mxu0 %v601
    %1427 = vmatmul.mubr.bf16.gmra.mxu0 %v600
    %v1428 = vpop.f32.mrf.mxu0
    %v1429 = vadd.f32 %v737, %v1428
    %v1430 = vpop.f32.mrf.mxu0
    %v1431 = vadd.f32 %v741, %v1430
    %v1432 = vpop.f32.mrf.mxu0
    %v1433 = vpop.f32.mrf.mxu0
    %1434 = vdwg.mxu0
    %1435 = vmatprep.subr.bf16.mxu0 %v1231
    %1436 = vmatpush1.bf16.msra.mxu0 %v1230
    %1437 = vmatprep.subr.bf16.mxu0 %v1227
    %1438 = vmatpush1.bf16.msra.mxu0 %v1226
    %1439 = vmatprep.subr.bf16.mxu0 %v1223
    %1440 = vmatpush1.bf16.msra.mxu0 %v1222
    %1441 = vmatprep.subr.bf16.mxu0 %v1219
    %1442 = vmatpush1.bf16.msra.mxu0 %v1218
    %1443 = vmatprep.subr.bf16.mxu0 %v1215
    %1444 = vmatpush1.bf16.msra.mxu0 %v1214
    %1445 = vmatprep.subr.bf16.mxu0 %v1211
    %1446 = vmatpush1.bf16.msra.mxu0 %v1210
    %1447 = vmatprep.subr.bf16.mxu0 %v1207
    %1448 = vmatpush1.bf16.msra.mxu0 %v1206
    %1449 = vmatprep.subr.bf16.mxu0 %v1203
    %1450 = vmatpush1.bf16.msra.mxu0 %v1202
    %1451 = vmatprep.subr.bf16.mxu0 %v1263
    %1452 = vmatpush2.bf16.msra.mxu0 %v1262
    %1453 = vmatprep.subr.bf16.mxu0 %v1259
    %1454 = vmatpush2.bf16.msra.mxu0 %v1258
    %1455 = vmatprep.subr.bf16.mxu0 %v1255
    %1456 = vmatpush2.bf16.msra.mxu0 %v1254
    %1457 = vmatprep.subr.bf16.mxu0 %v1251
    %1458 = vmatpush2.bf16.msra.mxu0 %v1250
    %1459 = vmatprep.subr.bf16.mxu0 %v1247
    %1460 = vmatpush2.bf16.msra.mxu0 %v1246
    %1461 = vmatprep.subr.bf16.mxu0 %v1243
    %1462 = vmatpush2.bf16.msra.mxu0 %v1242
    %1463 = vmatprep.subr.bf16.mxu0 %v1239
    %1464 = vmatpush2.bf16.msra.mxu0 %v1238
    %1465 = vmatprep.subr.bf16.mxu0 %v1235
    %1466 = vmatpush2.bf16.msra.mxu0 %v1234
    %1467 = vmatprep.mubr.bf16.mxu0 %v603
    %1468 = vmatmul.mubr.bf16.gmra.mxu0 %v602
    %v1469 = vpop.f32.mrf.mxu0
    %v1470 = vadd.f32 %v1429, %v1469
    %v1471 = vpop.f32.mrf.mxu0
    %v1472 = vadd.f32 %v1431, %v1471
    %v1473 = vpop.f32.mrf.mxu0
    %v1474 = vpop.f32.mrf.mxu0
    %1475 = vdwg.mxu0
    %1476 = vmatprep.subr.bf16.mxu0 %v1169
    %1477 = vmatpush1.bf16.msra.mxu0 %v1168
    %1478 = vmatprep.subr.bf16.mxu0 %v1165
    %1479 = vmatpush1.bf16.msra.mxu0 %v1164
    %1480 = vmatprep.subr.bf16.mxu0 %v1161
    %1481 = vmatpush1.bf16.msra.mxu0 %v1160
    %1482 = vmatprep.subr.bf16.mxu0 %v1157
    %1483 = vmatpush1.bf16.msra.mxu0 %v1156
    %1484 = vmatprep.subr.bf16.mxu0 %v1153
    %1485 = vmatpush1.bf16.msra.mxu0 %v1152
    %1486 = vmatprep.subr.bf16.mxu0 %v1149
    %1487 = vmatpush1.bf16.msra.mxu0 %v1148
    %1488 = vmatprep.subr.bf16.mxu0 %v1145
    %1489 = vmatpush1.bf16.msra.mxu0 %v1144
    %1490 = vmatprep.subr.bf16.mxu0 %v1141
    %1491 = vmatpush1.bf16.msra.mxu0 %v1140
    %1492 = vmatprep.subr.bf16.mxu0 %v1201
    %1493 = vmatpush2.bf16.msra.mxu0 %v1200
    %1494 = vmatprep.subr.bf16.mxu0 %v1197
    %1495 = vmatpush2.bf16.msra.mxu0 %v1196
    %1496 = vmatprep.subr.bf16.mxu0 %v1193
    %1497 = vmatpush2.bf16.msra.mxu0 %v1192
    %1498 = vmatprep.subr.bf16.mxu0 %v1189
    %1499 = vmatpush2.bf16.msra.mxu0 %v1188
    %1500 = vmatprep.subr.bf16.mxu0 %v1185
    %1501 = vmatpush2.bf16.msra.mxu0 %v1184
    %1502 = vmatprep.subr.bf16.mxu0 %v1181
    %1503 = vmatpush2.bf16.msra.mxu0 %v1180
    %1504 = vmatprep.subr.bf16.mxu0 %v1177
    %1505 = vmatpush2.bf16.msra.mxu0 %v1176
    %1506 = vmatprep.subr.bf16.mxu0 %v1173
    %1507 = vmatpush2.bf16.msra.mxu0 %v1172
    %1508 = vmatprep.mubr.bf16.mxu0 %v601
    %1509 = vmatmul.mubr.bf16.gmra.mxu0 %v600
    %v1510 = vpop.f32.mrf.mxu0
    %v1511 = vadd.f32 %v745, %v1510
    %v1512 = vpop.f32.mrf.mxu0
    %v1513 = vadd.f32 %v749, %v1512
    %v1514 = vpop.f32.mrf.mxu0
    %v1515 = vpop.f32.mrf.mxu0
    %1516 = vdwg.mxu0
    %1517 = vmatprep.subr.bf16.mxu0 %v1233
    %1518 = vmatpush1.bf16.msra.mxu0 %v1232
    %1519 = vmatprep.subr.bf16.mxu0 %v1229
    %1520 = vmatpush1.bf16.msra.mxu0 %v1228
    %1521 = vmatprep.subr.bf16.mxu0 %v1225
    %1522 = vmatpush1.bf16.msra.mxu0 %v1224
    %1523 = vmatprep.subr.bf16.mxu0 %v1221
    %1524 = vmatpush1.bf16.msra.mxu0 %v1220
    %1525 = vmatprep.subr.bf16.mxu0 %v1217
    %1526 = vmatpush1.bf16.msra.mxu0 %v1216
    %1527 = vmatprep.subr.bf16.mxu0 %v1213
    %1528 = vmatpush1.bf16.msra.mxu0 %v1212
    %1529 = vmatprep.subr.bf16.mxu0 %v1209
    %1530 = vmatpush1.bf16.msra.mxu0 %v1208
    %1531 = vmatprep.subr.bf16.mxu0 %v1205
    %1532 = vmatpush1.bf16.msra.mxu0 %v1204
    %1533 = vmatprep.subr.bf16.mxu0 %v1265
    %1534 = vmatpush2.bf16.msra.mxu0 %v1264
    %1535 = vmatprep.subr.bf16.mxu0 %v1261
    %1536 = vmatpush2.bf16.msra.mxu0 %v1260
    %1537 = vmatprep.subr.bf16.mxu0 %v1257
    %1538 = vmatpush2.bf16.msra.mxu0 %v1256
    %1539 = vmatprep.subr.bf16.mxu0 %v1253
    %1540 = vmatpush2.bf16.msra.mxu0 %v1252
    %1541 = vmatprep.subr.bf16.mxu0 %v1249
    %1542 = vmatpush2.bf16.msra.mxu0 %v1248
    %1543 = vmatprep.subr.bf16.mxu0 %v1245
    %1544 = vmatpush2.bf16.msra.mxu0 %v1244
    %1545 = vmatprep.subr.bf16.mxu0 %v1241
    %1546 = vmatpush2.bf16.msra.mxu0 %v1240
    %1547 = vmatprep.subr.bf16.mxu0 %v1237
    %1548 = vmatpush2.bf16.msra.mxu0 %v1236
    %1549 = vmatprep.mubr.bf16.mxu0 %v603
    %1550 = vmatmul.mubr.bf16.gmra.mxu0 %v602
    %v1551 = vpop.f32.mrf.mxu0
    %v1552 = vadd.f32 %v1511, %v1551
    %v1553 = vpop.f32.mrf.mxu0
    %v1554 = vadd.f32 %v1513, %v1553
    %v1555 = vpop.f32.mrf.mxu0
    %v1556 = vpop.f32.mrf.mxu0
    %1557 = vdwg.mxu0
    %v1558 = vmul.f32 %v1470, 0.5
    %v1559 = vmul.f32 %v1472, 0.5
    %v1560 = vmul.f32 %v1552, 0.5
    %v1561 = vmul.f32 %v1554, 0.5
    %v1562 = vtanh.pop %v1558
    %v1563 = vtanh.pop %v1559
    %v1564 = vtanh.pop %v1560
    %v1565 = vtanh.pop %v1561
    %v1566 = vmul.f32 %v1562, 0.5
    %v1567 = vmul.f32 %v1563, 0.5
    %v1568 = vmul.f32 %v1564, 0.5
    %v1569 = vmul.f32 %v1565, 0.5
    %v1570 = vadd.f32 %v1566, 0.5
    %v1571 = vadd.f32 %v1567, 0.5
    %v1572 = vadd.f32 %v1568, 0.5
    %v1573 = vadd.f32 %v1569, 0.5
    %v1574 = vpack.c.bf16 %v1570, %v1570
    %v1575 = vpack.c.bf16 %v1571, %v1571
    %v1576 = vpack.c.bf16 %v1572, %v1572
    %v1577 = vpack.c.bf16 %v1573, %v1573
    %v1578 = vld [vmem:[#allocation10] sm:$0xf]
    %v1579 = vld [vmem:[#allocation10 + $0x4] sm:$0xf]
    %v1580 = vld [vmem:[#allocation10 + $0x8] sm:$0xf]
    %v1581 = vld [vmem:[#allocation10 + $0xc] sm:$0xf]
    %v1582 = vld [vmem:[#allocation10 + $0x10] sm:$0xf]
    %v1583 = vld [vmem:[#allocation10 + $0x14] sm:$0xf]
    %v1584 = vld [vmem:[#allocation10 + $0x18] sm:$0xf]
    %v1585 = vld [vmem:[#allocation10 + $0x1c] sm:$0xf]
    %v1586 = vld [vmem:[#allocation10 + $0x20] sm:$0xf]
    %v1587 = vld [vmem:[#allocation10 + $0x24] sm:$0xf]
    %v1588 = vld [vmem:[#allocation10 + $0x28] sm:$0xf]
    %v1589 = vld [vmem:[#allocation10 + $0x2c] sm:$0xf]
    %v1590 = vld [vmem:[#allocation10 + $0x30] sm:$0xf]
    %v1591 = vld [vmem:[#allocation10 + $0x34] sm:$0xf]
    %v1592 = vld [vmem:[#allocation10 + $0x38] sm:$0xf]
    %v1593 = vld [vmem:[#allocation10 + $0x3c] sm:$0xf]
    %v1594 = vld [vmem:[#allocation10 + $0x40] sm:$0xf]
    %v1595 = vld [vmem:[#allocation10 + $0x44] sm:$0xf]
    %v1596 = vld [vmem:[#allocation10 + $0x48] sm:$0xf]
    %v1597 = vld [vmem:[#allocation10 + $0x4c] sm:$0xf]
    %v1598 = vld [vmem:[#allocation10 + $0x50] sm:$0xf]
    %v1599 = vld [vmem:[#allocation10 + $0x54] sm:$0xf]
    %v1600 = vld [vmem:[#allocation10 + $0x58] sm:$0xf]
    %v1601 = vld [vmem:[#allocation10 + $0x5c] sm:$0xf]
    %v1602 = vld [vmem:[#allocation10 + $0x60] sm:$0xf]
    %v1603 = vld [vmem:[#allocation10 + $0x64] sm:$0xf]
    %v1604 = vld [vmem:[#allocation10 + $0x68] sm:$0xf]
    %v1605 = vld [vmem:[#allocation10 + $0x6c] sm:$0xf]
    %v1606 = vld [vmem:[#allocation10 + $0x70] sm:$0xf]
    %v1607 = vld [vmem:[#allocation10 + $0x74] sm:$0xf]
    %v1608 = vld [vmem:[#allocation10 + $0x78] sm:$0xf]
    %v1609 = vld [vmem:[#allocation10 + $0x7c] sm:$0xf]
    %v1610 = vld [vmem:[#allocation10 + $0x80] sm:$0xf]
    %v1611 = vld [vmem:[#allocation10 + $0x84] sm:$0xf]
    %v1612 = vld [vmem:[#allocation10 + $0x88] sm:$0xf]
    %v1613 = vld [vmem:[#allocation10 + $0x8c] sm:$0xf]
    %v1614 = vld [vmem:[#allocation10 + $0x90] sm:$0xf]
    %v1615 = vld [vmem:[#allocation10 + $0x94] sm:$0xf]
    %v1616 = vld [vmem:[#allocation10 + $0x98] sm:$0xf]
    %v1617 = vld [vmem:[#allocation10 + $0x9c] sm:$0xf]
    %v1618 = vld [vmem:[#allocation10 + $0xa0] sm:$0xf]
    %v1619 = vld [vmem:[#allocation10 + $0xa4] sm:$0xf]
    %v1620 = vld [vmem:[#allocation10 + $0xa8] sm:$0xf]
    %v1621 = vld [vmem:[#allocation10 + $0xac] sm:$0xf]
    %v1622 = vld [vmem:[#allocation10 + $0xb0] sm:$0xf]
    %v1623 = vld [vmem:[#allocation10 + $0xb4] sm:$0xf]
    %v1624 = vld [vmem:[#allocation10 + $0xb8] sm:$0xf]
    %v1625 = vld [vmem:[#allocation10 + $0xbc] sm:$0xf]
    %v1626 = vld [vmem:[#allocation10 + $0xc0] sm:$0xf]
    %v1627 = vld [vmem:[#allocation10 + $0xc4] sm:$0xf]
    %v1628 = vld [vmem:[#allocation10 + $0xc8] sm:$0xf]
    %v1629 = vld [vmem:[#allocation10 + $0xcc] sm:$0xf]
    %v1630 = vld [vmem:[#allocation10 + $0xd0] sm:$0xf]
    %v1631 = vld [vmem:[#allocation10 + $0xd4] sm:$0xf]
    %v1632 = vld [vmem:[#allocation10 + $0xd8] sm:$0xf]
    %v1633 = vld [vmem:[#allocation10 + $0xdc] sm:$0xf]
    %v1634 = vld [vmem:[#allocation10 + $0xe0] sm:$0xf]
    %v1635 = vld [vmem:[#allocation10 + $0xe4] sm:$0xf]
    %v1636 = vld [vmem:[#allocation10 + $0xe8] sm:$0xf]
    %v1637 = vld [vmem:[#allocation10 + $0xec] sm:$0xf]
    %v1638 = vld [vmem:[#allocation10 + $0xf0] sm:$0xf]
    %v1639 = vld [vmem:[#allocation10 + $0xf4] sm:$0xf]
    %v1640 = vld [vmem:[#allocation10 + $0xf8] sm:$0xf]
    %v1641 = vld [vmem:[#allocation10 + $0xfc] sm:$0xf]
    %v1642 = vld [vmem:[%s6] sm:$0x1]
    %v1644 = vlaneseq
    %v1645 = vshrl.u32 %v1644, 7
    %v1646 = vsub.s32 0, %v1645
    %v1647 = vrot.slane %v1642, %v1646
    %v1713 = vunpack.c.l.b16 %v1578
    %v1714 = vunpack.c.l.b16 %v1579
    %v1715 = vunpack.c.l.b16 %v1580
    %v1716 = vunpack.c.l.b16 %v1581
    %v1717 = vunpack.c.l.b16 %v1582
    %v1718 = vunpack.c.l.b16 %v1583
    %v1719 = vunpack.c.l.b16 %v1584
    %v1720 = vunpack.c.l.b16 %v1585
    %v1721 = vunpack.c.l.b16 %v1586
    %v1722 = vunpack.c.l.b16 %v1587
    %v1723 = vunpack.c.l.b16 %v1588
    %v1724 = vunpack.c.l.b16 %v1589
    %v1725 = vunpack.c.l.b16 %v1590
    %v1726 = vunpack.c.l.b16 %v1591
    %v1727 = vunpack.c.l.b16 %v1592
    %v1728 = vunpack.c.l.b16 %v1593
    %v1729 = vunpack.c.l.b16 %v1594
    %v1730 = vunpack.c.l.b16 %v1595
    %v1731 = vunpack.c.l.b16 %v1596
    %v1732 = vunpack.c.l.b16 %v1597
    %v1733 = vunpack.c.l.b16 %v1598
    %v1734 = vunpack.c.l.b16 %v1599
    %v1735 = vunpack.c.l.b16 %v1600
    %v1736 = vunpack.c.l.b16 %v1601
    %v1737 = vunpack.c.l.b16 %v1602
    %v1738 = vunpack.c.l.b16 %v1603
    %v1739 = vunpack.c.l.b16 %v1604
    %v1740 = vunpack.c.l.b16 %v1605
    %v1741 = vunpack.c.l.b16 %v1606
    %v1742 = vunpack.c.l.b16 %v1607
    %v1743 = vunpack.c.l.b16 %v1608
    %v1744 = vunpack.c.l.b16 %v1609
    %v1745 = vunpack.c.l.b16 %v1610
    %v1746 = vunpack.c.l.b16 %v1611
    %v1747 = vunpack.c.l.b16 %v1612
    %v1748 = vunpack.c.l.b16 %v1613
    %v1749 = vunpack.c.l.b16 %v1614
    %v1750 = vunpack.c.l.b16 %v1615
    %v1751 = vunpack.c.l.b16 %v1616
    %v1752 = vunpack.c.l.b16 %v1617
    %v1753 = vunpack.c.l.b16 %v1618
    %v1754 = vunpack.c.l.b16 %v1619
    %v1755 = vunpack.c.l.b16 %v1620
    %v1756 = vunpack.c.l.b16 %v1621
    %v1757 = vunpack.c.l.b16 %v1622
    %v1758 = vunpack.c.l.b16 %v1623
    %v1759 = vunpack.c.l.b16 %v1624
    %v1760 = vunpack.c.l.b16 %v1625
    %v1761 = vunpack.c.l.b16 %v1626
    %v1762 = vunpack.c.l.b16 %v1627
    %v1763 = vunpack.c.l.b16 %v1628
    %v1764 = vunpack.c.l.b16 %v1629
    %v1765 = vunpack.c.l.b16 %v1630
    %v1766 = vunpack.c.l.b16 %v1631
    %v1767 = vunpack.c.l.b16 %v1632
    %v1768 = vunpack.c.l.b16 %v1633
    %v1769 = vunpack.c.l.b16 %v1634
    %v1770 = vunpack.c.l.b16 %v1635
    %v1771 = vunpack.c.l.b16 %v1636
    %v1772 = vunpack.c.l.b16 %v1637
    %v1773 = vunpack.c.l.b16 %v1638
    %v1774 = vunpack.c.l.b16 %v1639
    %v1775 = vunpack.c.l.b16 %v1640
    %v1776 = vunpack.c.l.b16 %v1641
    %v1777 = vpack.c.b16 %v1714, %v1713
    %v1778 = vpack.c.b16 %v1716, %v1715
    %v1779 = vpack.c.b16 %v1718, %v1717
    %v1780 = vpack.c.b16 %v1720, %v1719
    %v1781 = vpack.c.b16 %v1722, %v1721
    %v1782 = vpack.c.b16 %v1724, %v1723
    %v1783 = vpack.c.b16 %v1726, %v1725
    %v1784 = vpack.c.b16 %v1728, %v1727
    %v1785 = vpack.c.b16 %v1730, %v1729
    %v1786 = vpack.c.b16 %v1732, %v1731
    %v1787 = vpack.c.b16 %v1734, %v1733
    %v1788 = vpack.c.b16 %v1736, %v1735
    %v1789 = vpack.c.b16 %v1738, %v1737
    %v1790 = vpack.c.b16 %v1740, %v1739
    %v1791 = vpack.c.b16 %v1742, %v1741
    %v1792 = vpack.c.b16 %v1744, %v1743
    %v1793 = vpack.c.b16 %v1746, %v1745
    %v1794 = vpack.c.b16 %v1748, %v1747
    %v1795 = vpack.c.b16 %v1750, %v1749
    %v1796 = vpack.c.b16 %v1752, %v1751
    %v1797 = vpack.c.b16 %v1754, %v1753
    %v1798 = vpack.c.b16 %v1756, %v1755
    %v1799 = vpack.c.b16 %v1758, %v1757
    %v1800 = vpack.c.b16 %v1760, %v1759
    %v1801 = vpack.c.b16 %v1762, %v1761
    %v1802 = vpack.c.b16 %v1764, %v1763
    %v1803 = vpack.c.b16 %v1766, %v1765
    %v1804 = vpack.c.b16 %v1768, %v1767
    %v1805 = vpack.c.b16 %v1770, %v1769
    %v1806 = vpack.c.b16 %v1772, %v1771
    %v1807 = vpack.c.b16 %v1774, %v1773
    %v1808 = vpack.c.b16 %v1776, %v1775
    %1841 = vmatprep.subr.bf16.mxu0 0
    %1842 = vmatpush1.bf16.msra.mxu0 %v1784
    %1843 = vmatprep.subr.bf16.mxu0 0
    %1844 = vmatpush1.bf16.msra.mxu0 %v1783
    %1845 = vmatprep.subr.bf16.mxu0 0
    %1846 = vmatpush1.bf16.msra.mxu0 %v1782
    %1847 = vmatprep.subr.bf16.mxu0 0
    %1848 = vmatpush1.bf16.msra.mxu0 %v1781
    %1849 = vmatprep.subr.bf16.mxu0 0
    %1850 = vmatpush1.bf16.msra.mxu0 %v1780
    %1851 = vmatprep.subr.bf16.mxu0 0
    %1852 = vmatpush1.bf16.msra.mxu0 %v1779
    %1853 = vmatprep.subr.bf16.mxu0 0
    %1854 = vmatpush1.bf16.msra.mxu0 %v1778
    %1855 = vmatprep.subr.bf16.mxu0 0
    %1856 = vmatpush1.bf16.msra.mxu0 %v1777
    %1857 = vmatprep.subr.bf16.mxu0 0
    %1858 = vmatpush2.bf16.msra.mxu0 %v1792
    %1859 = vmatprep.subr.bf16.mxu0 0
    %1860 = vmatpush2.bf16.msra.mxu0 %v1791
    %1861 = vmatprep.subr.bf16.mxu0 0
    %1862 = vmatpush2.bf16.msra.mxu0 %v1790
    %1863 = vmatprep.subr.bf16.mxu0 0
    %1864 = vmatpush2.bf16.msra.mxu0 %v1789
    %1865 = vmatprep.subr.bf16.mxu0 0
    %1866 = vmatpush2.bf16.msra.mxu0 %v1788
    %1867 = vmatprep.subr.bf16.mxu0 0
    %1868 = vmatpush2.bf16.msra.mxu0 %v1787
    %1869 = vmatprep.subr.bf16.mxu0 0
    %1870 = vmatpush2.bf16.msra.mxu0 %v1786
    %1871 = vmatprep.subr.bf16.mxu0 0
    %1872 = vmatpush2.bf16.msra.mxu0 %v1785
    %1873 = vmatprep.mubr.bf16.mxu0 %v1575
    %1874 = vmatmul.mubr.bf16.gmra.mxu0 %v1574
    %v1875 = vpop.f32.mrf.mxu0
    %v1876 = vadd.f32 %v1647, %v1875
    %v1877 = vpop.f32.mrf.mxu0
    %v1878 = vpop.f32.mrf.mxu0
    %v1879 = vpop.f32.mrf.mxu0
    %1880 = vdwg.mxu0
    %1881 = vmatprep.subr.bf16.mxu0 0
    %1882 = vmatpush1.bf16.msra.mxu0 %v1800
    %1883 = vmatprep.subr.bf16.mxu0 0
    %1884 = vmatpush1.bf16.msra.mxu0 %v1799
    %1885 = vmatprep.subr.bf16.mxu0 0
    %1886 = vmatpush1.bf16.msra.mxu0 %v1798
    %1887 = vmatprep.subr.bf16.mxu0 0
    %1888 = vmatpush1.bf16.msra.mxu0 %v1797
    %1889 = vmatprep.subr.bf16.mxu0 0
    %1890 = vmatpush1.bf16.msra.mxu0 %v1796
    %1891 = vmatprep.subr.bf16.mxu0 0
    %1892 = vmatpush1.bf16.msra.mxu0 %v1795
    %1893 = vmatprep.subr.bf16.mxu0 0
    %1894 = vmatpush1.bf16.msra.mxu0 %v1794
    %1895 = vmatprep.subr.bf16.mxu0 0
    %1896 = vmatpush1.bf16.msra.mxu0 %v1793
    %1897 = vmatprep.subr.bf16.mxu0 0
    %1898 = vmatpush2.bf16.msra.mxu0 %v1808
    %1899 = vmatprep.subr.bf16.mxu0 0
    %1900 = vmatpush2.bf16.msra.mxu0 %v1807
    %1901 = vmatprep.subr.bf16.mxu0 0
    %1902 = vmatpush2.bf16.msra.mxu0 %v1806
    %1903 = vmatprep.subr.bf16.mxu0 0
    %1904 = vmatpush2.bf16.msra.mxu0 %v1805
    %1905 = vmatprep.subr.bf16.mxu0 0
    %1906 = vmatpush2.bf16.msra.mxu0 %v1804
    %1907 = vmatprep.subr.bf16.mxu0 0
    %1908 = vmatpush2.bf16.msra.mxu0 %v1803
    %1909 = vmatprep.subr.bf16.mxu0 0
    %1910 = vmatpush2.bf16.msra.mxu0 %v1802
    %1911 = vmatprep.subr.bf16.mxu0 0
    %1912 = vmatpush2.bf16.msra.mxu0 %v1801
    %1913 = vmatprep.mubr.bf16.mxu0 %v1577
    %1914 = vmatmul.mubr.bf16.gmra.mxu0 %v1576
    %v1915 = vpop.f32.mrf.mxu0
    %v1916 = vadd.f32 %v1876, %v1915
    %v1917 = vpop.f32.mrf.mxu0
    %v1918 = vpop.f32.mrf.mxu0
    %v1919 = vpop.f32.mrf.mxu0
    %1920 = vdwg.mxu0
    %1921 = vst [vmem:[#allocation11] sm:$0xff] %v1916
    // Predicated region
    $region50: #{tpu_custom_call.1} parent=1 // pred_check
      _
    $region51: #{tpu_custom_call.1} parent=1 // pred_check_branch
      %1923 = sbr.rel (0) target = $region53
    $region52: #{tpu_custom_call.1} parent=1 // pred_region
      %s1925 = ssub.s32 128, 128
      %1926 = vsyncadd [#allocation4], %s1925
      %s1928 = sshll.u32 [#allocation11], 4
      %s1929 = int_to_ptr.vmem [resolvable:$true] %s1928
      %1931 = dma.vmem_to_hbm [thread:$0]  %s1929, 128, %s7, [#allocation4]
    $region53: #{tpu_custom_call.1} parent=1 // pred_fallthru
      _
    // Predicated region
    $region54: #{tpu_custom_call.1} parent=1 // pred_check
      _
    $region55: #{tpu_custom_call.1} parent=1 // pred_check_branch
      %1933 = sbr.rel (0) target = $region57
    $region56: #{tpu_custom_call.1} parent=1 // pred_region
      %1934 = dma.done [#allocation4], 128
    $region57: #{tpu_custom_call.1} parent=1 // pred_fallthru
      _
    %1935 = vsyncpa [#allocation3], 1
    %1936 = vsyncpa [#allocation6], 1
    %1937 = vsyncpa [#allocation9], 1
    %1938 = vsyncpa [#allocation4], 1

</llo_original>
